<compile_context>
chip_gen: v7x
topology: tpu7x:2x2x1
jax: 0.10.0
libtpu: 0.0.40
codegen_flags: <defaults>
</compile_context>

<pallas_src>
import numpy as np
import jax
import jax.numpy as jnp
from jax import lax
from jax.experimental import pallas as pl
from jax.experimental.pallas import tpu as pltpu

# ----------------------------- configuration ---------------------------------
SAMPLING_RATE  = 16000
BLOCK_SIZE     = 8
N_MAG_ALLPASS  = 16
N_MAG_HARMONIC = 16
N_MAG_NOISE    = 16
N_MELS         = 80
HIDDEN         = 64

N_CTRL   = N_MAG_ALLPASS + N_MAG_HARMONIC + N_MAG_NOISE   # 48
CTRL_PAD = 64                                              # fused lane-dense ctrl slab
FEAT_PAD = 128                                             # lane-padded MLP input (K=128)
CHUNK    = 128                                             # cumsum chunk = lane width

B        = 2
N_FRAMES = 8
N_SAMPLES = N_FRAMES * BLOCK_SIZE


def _round_up(v, m):
    return ((v + m - 1) // m) * m


# ----------------------- kernel 1: phase + combtooth -------------------------
def _phase_comb_kernel(f0_ref, ph0_ref, tri_ref, sel_ref, comb_ref, xf_ref, carry_ref):
    # f0_ref : (B, TCT, 128)  time chunked onto lanes, chunks on sublanes
    # tri_ref: (128, 128) upper-tri constant (inclusive cumsum)
    # sel_ref: (128, FPB)  frame-position selection matrix
    # carry_ref: (B, 1) VMEM scratch — running (wrapped) phase carried across grid steps.
    @pl.when(pl.program_id(0) == 0)
    def _init():
        ph0 = ph0_ref[...] * (1.0 / (2.0 * np.pi))
        carry_ref[...] = ph0 - jnp.round(ph0)

    f0 = f0_ref[...]
    bsz, tct, chunk = f0.shape
    f = f0 * (1.0 / SAMPLING_RATE)

    # Level 1: intra-chunk inclusive cumsum on the MXU.
    # HIGHEST kept here on purpose: the sinc argument amplifies phase error by
    # sr/f0 (~160x), so single-pass bf16 accumulation is not accurate enough;
    # after blocking this matmul is tiny (K=128) and hidden under HBM traffic.
    cs = jnp.dot(f.reshape(bsz * tct, chunk), tri_ref[...],
                 precision=lax.Precision.HIGHEST,
                 preferred_element_type=jnp.float32).reshape(bsz, tct, chunk)

    # Level 2: per-chunk totals (exact f32) + exclusive prefix inside this tile.
    tot = jnp.sum(f, axis=-1)                               # (B, TCT)
    if tct > 1:
        src = lax.broadcasted_iota(jnp.int32, (tct, tct), 1)
        dst = lax.broadcasted_iota(jnp.int32, (tct, tct), 0)
        excl = jnp.where(src < dst, 1.0, 0.0).astype(jnp.float32)   # excl[j,i]=1 iff i<j
        ex = jnp.sum(tot[:, None, :] * excl[None, :, :], axis=-1)   # (B, TCT)
    else:
        ex = jnp.zeros_like(tot)

    carry = carry_ref[...]                                  # (B, 1) — read before update
    x = cs + ex[:, :, None] + carry[:, :, None]
    # re-wrap the carry every step: keeps it bounded so f32 never loses fractional bits.
    new_carry = carry + jnp.sum(tot, axis=-1, keepdims=True)
    carry_ref[...] = new_carry - jnp.round(new_carry)

    # TODO(synk): PyTorch does this cumsum in float64; TPU has no f64, using a wrapped
    #             f32 carry instead (exact modulo-1 arithmetic up to f32 rounding).
    x = x - jnp.round(x)                                    # wrap to (-0.5, 0.5]

    # combtooth = sinc(sr * x / (f0 + 1e-3)); divides go to the EUP via approx recip.
    inv_f0 = pl.reciprocal(f0 + 1e-3, approx=True)
    arg = (float(SAMPLING_RATE) * x) * inv_f0
    pa = np.pi * arg
    small = jnp.abs(arg) < 1e-6
    comb_ref[...] = jnp.where(
        small, 1.0,
        jnp.sin(pa) * pl.reciprocal(jnp.where(small, 1.0, pa), approx=True))

    # Frame-rate wrapped phase only (no full-rate writeback): selection matmul.
    xf = jnp.dot(x.reshape(bsz * tct, chunk), sel_ref[...],
                 precision=lax.Precision.HIGHEST,
                 preferred_element_type=jnp.float32)
    xf_ref[...] = xf.reshape(bsz, tct, -1)


def phase_combtooth(f0_up, initial_phase, block_size=BLOCK_SIZE):
    """f0_up: (B, N) sample-rate f0; returns combtooth (B, N) and wrapped frame phase
    (B, N // block_size)."""
    b, n = f0_up.shape
    fpb = CHUNK // block_size                               # frames per chunk
    n_chunks = -(-n // CHUNK)
    tct = n_chunks if n_chunks <= 8 else 8                  # chunks per grid step
    n_chunks_pad = _round_up(n_chunks, tct)
    n_pad = n_chunks_pad * CHUNK

    f0c = jnp.pad(f0_up.astype(jnp.float32), ((0, 0), (0, n_pad - n)))
    f0c = f0c.reshape(b, n_chunks_pad, CHUNK)

    tri = jnp.triu(jnp.ones((CHUNK, CHUNK), jnp.float32))   # precomputed, passed in
    sel_np = np.zeros((CHUNK, fpb), np.float32)
    sel_np[np.arange(fpb) * block_size, np.arange(fpb)] = 1.0
    sel = jnp.asarray(sel_np)

    grid = (n_chunks_pad // tct,)
    comb, xf = pl.pallas_call(
        _phase_comb_kernel,
        out_shape=(jax.ShapeDtypeStruct((b, n_chunks_pad, CHUNK), jnp.float32),
                   jax.ShapeDtypeStruct((b, n_chunks_pad, fpb), jnp.float32)),
        grid=grid,
        in_specs=[pl.BlockSpec((b, tct, CHUNK), lambda i: (0, i, 0)),
                  pl.BlockSpec((b, 1), lambda i: (0, 0)),
                  pl.BlockSpec((CHUNK, CHUNK), lambda i: (0, 0)),
                  pl.BlockSpec((CHUNK, fpb), lambda i: (0, 0))],
        out_specs=(pl.BlockSpec((b, tct, CHUNK), lambda i: (0, i, 0)),
                   pl.BlockSpec((b, tct, fpb), lambda i: (0, i, 0))),
        scratch_shapes=[pltpu.VMEM((b, 1), jnp.float32)],
        # time axis carries the cumsum prefix -> must stay sequential.
        compiler_params=pltpu.CompilerParams(dimension_semantics=("arbitrary",)),
    )(f0c, initial_phase.astype(jnp.float32), tri, sel)

    combtooth = comb.reshape(b, n_pad)[:, :n]
    xw = xf.reshape(b, n_chunks_pad * fpb)[:, : n // block_size]
    return combtooth, xw


# ------------------- kernel 2: Mel2Control + ctrl post-proc ------------------
# TODO(synk): Mel2Control source is not provided; approximated with a 2-layer MLP over
#             [mel, sin(phase), cos(phase)] producing the three control splits.
def _mel2ctrl_kernel(x_ref, w1_ref, b1_ref, w2_ref, b2_ref, tri_ref, out_ref):
    # x_ref : (ROWS, 128) lane-padded features; out_ref: (ROWS, 64) fused ctrl slab.
    x = x_ref[...]
    h = jnp.dot(x, w1_ref[...], preferred_element_type=jnp.float32) + b1_ref[...]
    h = jnp.where(h > 0, h, 0.01 * h)                        # LeakyReLU
    raw = jnp.dot(h, w2_ref[...], preferred_element_type=jnp.float32) + b2_ref[...]

    a, hm = N_MAG_ALLPASS, N_MAG_HARMONIC
    gd = np.pi * jnp.tanh(raw[:, :a])                        # group delay
    phase = jnp.dot(gd, tri_ref[...], precision=lax.Precision.HIGHEST,
                    preferred_element_type=jnp.float32)      # cumsum over 16 mags
    apr = jnp.cos(phase)                                     # exp(1j*cumsum) — real
    api = jnp.sin(phase)                                     #               — imag
    src = jnp.exp(raw[:, a:a + hm])
    noi = jnp.exp(raw[:, a + hm:a + hm + N_MAG_NOISE]) * (1.0 / 128.0)
    # single lane-dense store instead of four 16-lane masked stores
    out_ref[...] = jnp.concatenate([apr, api, src, noi], axis=-1)


def mel2ctrl(params, feat):
    """feat: (m, FEAT_PAD). Returns fused ctrl slab (m, CTRL_PAD)."""
    m = feat.shape[0]
    row_tile = 256 if m >= 256 else _round_up(m, 8)
    m_pad = _round_up(m, row_tile)
    x = jnp.pad(feat.astype(jnp.float32), ((0, m_pad - m), (0, 0)))
    tri16 = jnp.triu(jnp.ones((N_MAG_ALLPASS, N_MAG_ALLPASS), jnp.float32))

    out = pl.pallas_call(
        _mel2ctrl_kernel,
        out_shape=jax.ShapeDtypeStruct((m_pad, CTRL_PAD), jnp.float32),
        grid=(m_pad // row_tile,),
        in_specs=[pl.BlockSpec((row_tile, FEAT_PAD), lambda i: (i, 0)),
                  pl.BlockSpec((FEAT_PAD, HIDDEN), lambda i: (0, 0)),
                  pl.BlockSpec((1, HIDDEN), lambda i: (0, 0)),
                  pl.BlockSpec((HIDDEN, CTRL_PAD), lambda i: (0, 0)),
                  pl.BlockSpec((1, CTRL_PAD), lambda i: (0, 0)),
                  pl.BlockSpec((N_MAG_ALLPASS, N_MAG_ALLPASS), lambda i: (0, 0))],
        out_specs=pl.BlockSpec((row_tile, CTRL_PAD), lambda i: (i, 0)),
        # row tiles are independent -> parallel (sharded across megacore TCs)
        compiler_params=pltpu.CompilerParams(dimension_semantics=("parallel",)),
    )(x, params['w1'], params['b1'], params['w2'], params['b2'], tri16)
    return out[:m]


# ------------------------------- JAX glue -------------------------------------
def upsample(signal, factor):
    """signal: (B, n_frames, 1) -> (B, n_frames*factor, 1); matches
    F.interpolate(cat(sig, sig[-1:]), size=n*factor+1, mode='linear', align_corners=True)[:-1]."""
    b, n, _ = signal.shape
    s = jnp.concatenate([signal, signal[:, -1:, :]], axis=1)          # (B, n+1, 1)
    pos = jnp.arange(n * factor, dtype=jnp.float32) / factor
    i0 = jnp.floor(pos).astype(jnp.int32)
    i1 = jnp.minimum(i0 + 1, n)
    w = (pos - i0)[None, :, None]
    return s[:, i0, :] * (1.0 - w) + s[:, i1, :] * w


def frequency_filter(audio, filt_spec, block_size, hann_window=True, half_width_frames=None):
    """Time-varying FIR filtering via overlap-add FFT convolution (pure JAX — the
    complex spectral multiply is left to XLA to fuse with rfft/irfft).
    audio: (B, N); filt_spec: complex (B, n_frames, n_mag)."""
    bb, n = audio.shape
    _, f, n_mag = filt_spec.shape
    ir_size = 2 * (n_mag - 1)

    ir = jnp.fft.irfft(filt_spec.astype(jnp.complex64), n=ir_size, axis=-1)   # (B, F, ir)
    ir = jnp.roll(ir, ir_size // 2, axis=-1)                                  # centered form
    if hann_window:
        if half_width_frames is None:
            win = 0.5 * (1.0 - jnp.cos(2.0 * np.pi * jnp.arange(ir_size) / (ir_size - 1)))
            ir = ir * win[None, None, :]
        else:
            # TODO(synk): approximation of DDSP-SVC apply_dynamic_window_to_impulse_response.
            t = (jnp.arange(ir_size) - ir_size // 2).astype(jnp.float32)
            r = t[None, None, :] / half_width_frames                          # (B, F, ir)
            ir = ir * jnp.where(jnp.abs(r) < 1.0, 0.5 * (1.0 + jnp.cos(np.pi * r)), 0.0)

    frames = audio.reshape(bb, f, block_size)
    fft_size = int(2 ** np.ceil(np.log2(block_size + ir_size - 1)))
    prod = jnp.fft.rfft(frames, n=fft_size, axis=-1) * jnp.fft.rfft(ir, n=fft_size, axis=-1)
    y = jnp.fft.irfft(prod, n=fft_size, axis=-1)                              # (B, F, fft)

    total = f * block_size + fft_size
    idx = (jnp.arange(f)[:, None] * block_size + jnp.arange(fft_size)[None, :]).reshape(-1)
    out = jnp.zeros((bb, total), jnp.float32).at[:, idx].add(y.reshape(bb, -1))
    delay = ir_size // 2
    return out[:, delay:delay + n]


def init_params(key):
    k1, k2 = jax.random.split(key)
    n_in = N_MELS + 2
    w1 = jax.random.normal(k1, (n_in, HIDDEN), jnp.float32) / np.sqrt(n_in)
    w2 = jax.random.normal(k2, (HIDDEN, N_CTRL), jnp.float32) / np.sqrt(HIDDEN)
    # lane-pad K to 128 and n_out to 64 so every kernel matmul / store is dense
    w1p = jnp.zeros((FEAT_PAD, HIDDEN), jnp.float32).at[:n_in].set(w1)
    w2p = jnp.zeros((HIDDEN, CTRL_PAD), jnp.float32).at[:, :N_CTRL].set(w2)
    return dict(
        w1=w1p, b1=jnp.zeros((1, HIDDEN), jnp.float32),
        w2=w2p, b2=jnp.zeros((1, CTRL_PAD), jnp.float32),
    )


def combsub_forward(params, mel_frames, f0_frames, noise_key, initial_phase=None):
    b, n_frames, n_mels = mel_frames.shape

    f0 = upsample(f0_frames, BLOCK_SIZE)[..., 0].astype(jnp.float32)  # (B, N)
    if initial_phase is None:
        initial_phase = jnp.zeros((b, 1), jnp.float32)
    initial_phase = initial_phase.reshape(b, 1)

    combtooth, xw = phase_combtooth(f0, initial_phase)                # Pallas kernel 1
    phase_frames = 2.0 * np.pi * xw[..., None]                        # (B, n_frames, 1)

    # lane-padded feature slab for the MLP kernel: [mel | sin(phase) | cos(phase) | 0...]
    feat = jnp.concatenate(
        [mel_frames.astype(jnp.float32),
         jnp.sin(phase_frames),
         jnp.cos(phase_frames),
         jnp.zeros((b, n_frames, FEAT_PAD - n_mels - 2), jnp.float32)], axis=-1)
    ctrl = mel2ctrl(params, feat.reshape(b * n_frames, FEAT_PAD))     # Pallas kernel 2
    ctrl = ctrl.reshape(b, n_frames, CTRL_PAD)

    a = N_MAG_ALLPASS
    allpass = (ctrl[..., :a] + 1j * ctrl[..., a:2 * a]).astype(jnp.complex64)
    src_param = ctrl[..., 2 * a:2 * a + N_MAG_HARMONIC]
    noise_param = ctrl[..., 2 * a + N_MAG_HARMONIC:2 * a + N_MAG_HARMONIC + N_MAG_NOISE]

    # combtooth -> allpass (group delay) -> harmonic magnitude filter
    harmonic = frequency_filter(combtooth, allpass, BLOCK_SIZE, hann_window=False)
    half_width = 1.5 * SAMPLING_RATE / (f0_frames + 0.001)            # (B, n_frames, 1)
    harmonic = frequency_filter(harmonic, src_param.astype(jnp.complex64), BLOCK_SIZE,
                                hann_window=True, half_width_frames=half_width)

    noise = jax.random.uniform(noise_key, harmonic.shape, jnp.float32) * 2.0 - 1.0
    noise = frequency_filter(noise, noise_param.astype(jnp.complex64), BLOCK_SIZE,
                             hann_window=True)

    signal = harmonic + noise
    return signal, phase_frames, (harmonic, noise)


# --------------------------------- main ---------------------------------------
if __name__ == "__main__":
    key = jax.random.PRNGKey(0)
    k_p, k_mel, k_f0, k_noise = jax.random.split(key, 4)

    params = init_params(k_p)
    mel_frames = jax.random.normal(k_mel, (B, N_FRAMES, N_MELS), jnp.float32) * 0.5
    f0_frames = 100.0 + 200.0 * jax.random.uniform(k_f0, (B, N_FRAMES, 1), jnp.float32)

    signal, phase_frames, (harmonic, noise) = combsub_forward(
        params, mel_frames, f0_frames, k_noise)

    jax.block_until_ready(signal)
    jax.block_until_ready(phase_frames)
    jax.block_until_ready(harmonic)
    jax.block_until_ready(noise)

    assert signal.shape == (B, N_SAMPLES)
    assert phase_frames.shape == (B, N_FRAMES, 1)
    assert bool(jnp.all(jnp.isfinite(signal)))
    print("KERNEL_OK")
</pallas_src>

<mosaic_0001>
module attributes {stable_mosaic.version = 11 : i64} {
  func.func @_phase_comb_kernel(%arg0: i32, %arg1: memref<2x1x128xf32, #tpu.memory_space<vmem>>, %arg2: memref<2x1xf32, #tpu.memory_space<vmem>>, %arg3: memref<128x128xf32, #tpu.memory_space<vmem>>, %arg4: memref<128x16xf32, #tpu.memory_space<vmem>>, %arg5: memref<2x1x128xf32, #tpu.memory_space<vmem>>, %arg6: memref<2x1x16xf32, #tpu.memory_space<vmem>>, %arg7: memref<2x1xf32, #tpu.memory_space<vmem>>) attributes {dimension_semantics = [#tpu.dimension_semantics<arbitrary>], iteration_bounds = array<i64: 1>, scalar_prefetch = 0 : i64, scratch_operands = 1 : i64, tpu.core_type = #tpu.core_type<tc>, window_params = [{transform_indices = @transform_0, window_bounds = array<i64: 2, 1, 128>}, {pipeline_mode = #tpu.pipeline_mode<synchronous>, transform_indices = @transform_1, window_bounds = array<i64: 2, 1>}, {pipeline_mode = #tpu.pipeline_mode<synchronous>, transform_indices = @transform_2, window_bounds = array<i64: 128, 128>}, {pipeline_mode = #tpu.pipeline_mode<synchronous>, transform_indices = @transform_3, window_bounds = array<i64: 128, 16>}, {transform_indices = @transform_4, window_bounds = array<i64: 2, 1, 128>}, {transform_indices = @transform_5, window_bounds = array<i64: 2, 1, 16>}]} {
    %c0_i32 = arith.constant 0 : i32
    %0 = arith.cmpi eq, %arg0, %c0_i32 : i32
    %1 = arith.extui %0 : i1 to i32
    %c0_i32_0 = arith.constant 0 : i32
    %2 = arith.cmpi ne, %1, %c0_i32_0 : i32
    scf.if %2 {
      %c0_28 = arith.constant 0 : index
      %c0_29 = arith.constant 0 : index
      %51 = vector.load %arg2[%c0_28, %c0_29] : memref<2x1xf32, #tpu.memory_space<vmem>>, vector<2x1xf32>
      %cst_30 = arith.constant 0.159154937 : f32
      %52 = vector.broadcast %cst_30 : f32 to vector<2x1xf32>
      %53 = arith.mulf %51, %52 : vector<2x1xf32>
      %54 = math.roundeven %53 : vector<2x1xf32>
      %55 = arith.subf %53, %54 : vector<2x1xf32>
      %c0_31 = arith.constant 0 : index
      %c0_32 = arith.constant 0 : index
      %56 = vector.load %arg7[%c0_31, %c0_32] : memref<2x1xf32, #tpu.memory_space<vmem>>, vector<2x1xf32>
      tpu.vector_store %arg7[%c0_31, %c0_32], %55 {strides = array<i32>} : memref<2x1xf32, #tpu.memory_space<vmem>>, vector<2x1xf32>,
    } else {
    }
    %c0 = arith.constant 0 : index
    %c0_1 = arith.constant 0 : index
    %c0_2 = arith.constant 0 : index
    %3 = vector.load %arg1[%c0, %c0_1, %c0_2] : memref<2x1x128xf32, #tpu.memory_space<vmem>>, vector<2x1x128xf32>
    %cst = arith.constant 6.250000e-05 : f32
    %4 = vector.broadcast %cst : f32 to vector<2x1x128xf32>
    %5 = arith.mulf %3, %4 : vector<2x1x128xf32>
    %6 = vector.shape_cast %5 : vector<2x1x128xf32> to vector<2x128xf32>
    %c0_3 = arith.constant 0 : index
    %c0_4 = arith.constant 0 : index
    %7 = vector.load %arg3[%c0_3, %c0_4] : memref<128x128xf32, #tpu.memory_space<vmem>>, vector<128x128xf32>
    %cst_5 = arith.constant dense<0.000000e+00> : vector<2x128xf32>
    %8 = tpu.matmul %6, %7, %cst_5 {dimension_numbers = #tpu.dot_dimension_numbers<[1], [0], [0], [1], [0, 0, 1, 1], [], []>, precision = #tpu.contract_precision<fp32>} : vector<2x128xf32>, vector<128x128xf32>, vector<2x128xf32> -> vector<2x128xf32>
    %9 = vector.shape_cast %8 : vector<2x128xf32> to vector<2x1x128xf32>
    %cst_6 = arith.constant dense<0.000000e+00> : vector<2x1xf32>
    %10 = vector.multi_reduction <add>, %5, %cst_6 [2] : vector<2x1x128xf32> to vector<2x1xf32>
    %cst_7 = arith.constant 0.000000e+00 : f32
    %11 = vector.broadcast %cst_7 : f32 to vector<2x1xf32>
    %c0_8 = arith.constant 0 : index
    %c0_9 = arith.constant 0 : index
    %12 = vector.load %arg7[%c0_8, %c0_9] : memref<2x1xf32, #tpu.memory_space<vmem>>, vector<2x1xf32>
    %13 = vector.shape_cast %11 : vector<2x1xf32> to vector<2x1x1xf32>
    %14 = vector.broadcast %13 : vector<2x1x1xf32> to vector<2x1x128xf32>
    %15 = arith.addf %9, %14 : vector<2x1x128xf32>
    %16 = vector.shape_cast %12 : vector<2x1xf32> to vector<2x1x1xf32>
    %17 = vector.broadcast %16 : vector<2x1x1xf32> to vector<2x1x128xf32>
    %18 = arith.addf %15, %17 : vector<2x1x128xf32>
    %cst_10 = arith.constant dense<0.000000e+00> : vector<2xf32>
    %19 = vector.multi_reduction <add>, %10, %cst_10 [1] : vector<2x1xf32> to vector<2xf32>
    %20 = vector.shape_cast %19 : vector<2xf32> to vector<2x1xf32>
    %21 = arith.addf %12, %20 : vector<2x1xf32>
    %22 = math.roundeven %21 : vector<2x1xf32>
    %23 = arith.subf %21, %22 : vector<2x1xf32>
    %c0_11 = arith.constant 0 : index
    %c0_12 = arith.constant 0 : index
    %24 = vector.load %arg7[%c0_11, %c0_12] : memref<2x1xf32, #tpu.memory_space<vmem>>, vector<2x1xf32>
    tpu.vector_store %arg7[%c0_11, %c0_12], %23 {strides = array<i32>} : memref<2x1xf32, #tpu.memory_space<vmem>>, vector<2x1xf32>,
    %25 = math.roundeven %18 : vector<2x1x128xf32>
    %26 = arith.subf %18, %25 : vector<2x1x128xf32>
    %cst_13 = arith.constant 1.000000e-03 : f32
    %27 = vector.broadcast %cst_13 : f32 to vector<2x1x128xf32>
    %28 = arith.addf %3, %27 : vector<2x1x128xf32>
    %29 = tpu.reciprocal %28 {approx = true} : vector<2x1x128xf32> -> vector<2x1x128xf32>
    %cst_14 = arith.constant 1.600000e+04 : f32
    %30 = vector.broadcast %cst_14 : f32 to vector<2x1x128xf32>
    %31 = arith.mulf %30, %26 : vector<2x1x128xf32>
    %32 = arith.mulf %31, %29 : vector<2x1x128xf32>
    %cst_15 = arith.constant 3.14159274 : f32
    %33 = vector.broadcast %cst_15 : f32 to vector<2x1x128xf32>
    %34 = arith.mulf %33, %32 : vector<2x1x128xf32>
    %35 = math.absf %32 : vector<2x1x128xf32>
    %cst_16 = arith.constant 9.99999997E-7 : f32
    %36 = vector.broadcast %cst_16 : f32 to vector<2x1x128xf32>
    %37 = arith.cmpf olt, %35, %36 : vector<2x1x128xf32>
    %38 = math.sin %34 : vector<2x1x128xf32>
    %cst_17 = arith.constant 1.000000e+00 : f32
    %39 = vector.broadcast %cst_17 : f32 to vector<2x1x128xf32>
    %40 = arith.select %37, %39, %34 : vector<2x1x128xi1>, vector<2x1x128xf32>
    %41 = tpu.reciprocal %40 {approx = true} : vector<2x1x128xf32> -> vector<2x1x128xf32>
    %42 = arith.mulf %38, %41 : vector<2x1x128xf32>
    %cst_18 = arith.constant 1.000000e+00 : f32
    %43 = vector.broadcast %cst_18 : f32 to vector<2x1x128xf32>
    %44 = arith.select %37, %43, %42 : vector<2x1x128xi1>, vector<2x1x128xf32>
    %c0_19 = arith.constant 0 : index
    %c0_20 = arith.constant 0 : index
    %c0_21 = arith.constant 0 : index
    %45 = vector.load %arg5[%c0_19, %c0_20, %c0_21] : memref<2x1x128xf32, #tpu.memory_space<vmem>>, vector<2x1x128xf32>
    tpu.vector_store %arg5[%c0_19, %c0_20, %c0_21], %44 {strides = array<i32>} : memref<2x1x128xf32, #tpu.memory_space<vmem>>, vector<2x1x128xf32>,
    %46 = vector.shape_cast %26 : vector<2x1x128xf32> to vector<2x128xf32>
    %c0_22 = arith.constant 0 : index
    %c0_23 = arith.constant 0 : index
    %47 = vector.load %arg4[%c0_22, %c0_23] : memref<128x16xf32, #tpu.memory_space<vmem>>, vector<128x16xf32>
    %cst_24 = arith.constant dense<0.000000e+00> : vector<2x16xf32>
    %48 = tpu.matmul %46, %47, %cst_24 {dimension_numbers = #tpu.dot_dimension_numbers<[1], [0], [0], [1], [0, 0, 1, 1], [], []>, precision = #tpu.contract_precision<fp32>} : vector<2x128xf32>, vector<128x16xf32>, vector<2x16xf32> -> vector<2x16xf32>
    %49 = vector.shape_cast %48 : vector<2x16xf32> to vector<2x1x16xf32>
    %c0_25 = arith.constant 0 : index
    %c0_26 = arith.constant 0 : index
    %c0_27 = arith.constant 0 : index
    %50 = vector.load %arg6[%c0_25, %c0_26, %c0_27] : memref<2x1x16xf32, #tpu.memory_space<vmem>>, vector<2x1x16xf32>
    tpu.vector_store %arg6[%c0_25, %c0_26, %c0_27], %49 {strides = array<i32>} : memref<2x1x16xf32, #tpu.memory_space<vmem>>, vector<2x1x16xf32>,
    return
  }
  func.func @transform_0(%arg0: i32) -> (i32, i32, i32) {
    %c0_i32 = arith.constant 0 : i32
    %c0_i32_0 = arith.constant 0 : i32
    %c0_i32_1 = arith.constant 0 : i32
    return %c0_i32, %arg0, %c0_i32_0 : i32, i32, i32
  }
  func.func @transform_1(%arg0: i32) -> (i32, i32) {
    %c0_i32 = arith.constant 0 : i32
    %c0_i32_0 = arith.constant 0 : i32
    %c0_i32_1 = arith.constant 0 : i32
    return %c0_i32, %c0_i32_0 : i32, i32
  }
  func.func @transform_2(%arg0: i32) -> (i32, i32) {
    %c0_i32 = arith.constant 0 : i32
    %c0_i32_0 = arith.constant 0 : i32
    %c0_i32_1 = arith.constant 0 : i32
    return %c0_i32, %c0_i32_0 : i32, i32
  }
  func.func @transform_3(%arg0: i32) -> (i32, i32) {
    %c0_i32 = arith.constant 0 : i32
    %c0_i32_0 = arith.constant 0 : i32
    %c0_i32_1 = arith.constant 0 : i32
    return %c0_i32, %c0_i32_0 : i32, i32
  }
  func.func @transform_4(%arg0: i32) -> (i32, i32, i32) {
    %c0_i32 = arith.constant 0 : i32
    %c0_i32_0 = arith.constant 0 : i32
    %c0_i32_1 = arith.constant 0 : i32
    return %c0_i32, %arg0, %c0_i32_0 : i32, i32, i32
  }
  func.func @transform_5(%arg0: i32) -> (i32, i32, i32) {
    %c0_i32 = arith.constant 0 : i32
    %c0_i32_0 = arith.constant 0 : i32
    %c0_i32_1 = arith.constant 0 : i32
    return %c0_i32, %arg0, %c0_i32_0 : i32, i32, i32
  }
}

</mosaic_0001>

<llo_original>
// kernel: tpu_custom_call.1
$region0: #{tpu_custom_call.1}
  #allocation0 [shape = 'u32[]', space=smem, size = 0x4, offset = 0x4, fixed_abs, tag = 'smem constant byte address 0x4 - core index']
  #allocation1 [shape = 'u32[144,128]{1,0:T(1,128)}', space=vmem, size = 0x12000, scoped, tag = 'internal scratch']
  #allocation2 [shape = 'f32[2,1]{1,0:T(2,128)}', space=vmem, size = 0x400, scoped, tag = 'scratch operand']
  %s0 = inlined_call_operand.vmem [shape: f32[2,1,128], index: 0, kind: input, shape index: {}]
  %s1 = inlined_call_operand.vmem [shape: f32[2,1], index: 1, kind: input, shape index: {}]
  %s2 = inlined_call_operand.vmem [shape: f32[128,128], index: 2, kind: input, shape index: {}]
  %s3 = inlined_call_operand.vmem [shape: f32[128,16], index: 3, kind: input, shape index: {}]
  %s4 = inlined_call_operand.hbm [shape: f32[2,1,128], index: 4, kind: output, shape index: {0}]
  %s5 = inlined_call_operand.hbm [shape: f32[2,1,16], index: 5, kind: output, shape index: {1}]
  %6 = xla_tuple %s4, %s5
  %s7 = sld [smem:[#allocation0]]
  $region38: #{tpu_custom_call.1} parent=0
    _
  %s9 = ssub.s32 1, %s7
  %s10 = scalar_select 0, %s9, %s7
  $region1: #{tpu_custom_call.1} parent=0
    #allocation3 [shape = 'u8[1024]{0}', space=vmem, size = 0x400, scoped, tag = 'output window, operand 0, single buffered']
    #allocation4 [shape = 's32[1]{0}', space=sflag, size = 0x4, scoped, tag = 'scoped memory for tpu_custom_call.1']
    #allocation5 [shape = 'u8[1024]{0}', space=vmem, size = 0x400, scoped, tag = 'output window, operand 1, single buffered']
    #allocation6 [shape = 's32[1]{0}', space=sflag, size = 0x4, scoped, tag = 'scoped memory for tpu_custom_call.1']
    %11 = vsyncpa [#allocation4], 0
    %12 = vsyncpa [#allocation6], 0
    // Predicated region
    $region2: #{tpu_custom_call.1} parent=1 // pred_check
      _
    $region3: #{tpu_custom_call.1} parent=1 // pred_check_branch
      %14 = sbr.rel (0) target = $region5
    $region4: #{tpu_custom_call.1} parent=1 // pred_region
      _
    $region5: #{tpu_custom_call.1} parent=1 // pred_fallthru
      _
    // Predicated region
    $region6: #{tpu_custom_call.1} parent=1 // pred_check
      _
    $region7: #{tpu_custom_call.1} parent=1 // pred_check_branch
      %16 = sbr.rel (0) target = $region9
    $region8: #{tpu_custom_call.1} parent=1 // pred_region
      _
    $region9: #{tpu_custom_call.1} parent=1 // pred_fallthru
      _
    // Predicated region
    $region10: #{tpu_custom_call.1} parent=1 // pred_check
      _
    $region11: #{tpu_custom_call.1} parent=1 // pred_check_branch
      %18 = sbr.rel (0) target = $region13
    $region12: #{tpu_custom_call.1} parent=1 // pred_region
      _
    $region13: #{tpu_custom_call.1} parent=1 // pred_fallthru
      _
    // Predicated region
    $region14: #{tpu_custom_call.1} parent=1 // pred_check
      _
    $region15: #{tpu_custom_call.1} parent=1 // pred_check_branch
      %20 = sbr.rel (0) target = $region17
    $region16: #{tpu_custom_call.1} parent=1 // pred_region
      _
    $region17: #{tpu_custom_call.1} parent=1 // pred_fallthru
      _
    %p21 = scmp.eq.s32.totalorder 0, 0
    // Predicated region
    $region18: #{tpu_custom_call.1} parent=1 // pred_check
      %p22 = pneg %p21
    $region19: #{tpu_custom_call.1} parent=1 // pred_check_branch
      %24 = sbr.rel (%p22) target = $region21
    $region20: #{tpu_custom_call.1} parent=1 // pred_region
      %v25 = vld [vmem:[%s1] sm:$0x3]
      %v26 = vmul.f32 %v25, 0.15915494
      %v27 = vround.ne.pseudo %v26
      %v28 = vsub.f32 %v26, %v27
      %vm29 = vcmask 1024
      %30 = vst.msk [vmem:[#allocation2] sm:$0x3] %vm29, %v28
    $region21: #{tpu_custom_call.1} parent=1 // pred_fallthru
      _
    %v31 = vld [vmem:[%s0] sm:$0x1]
    %v32 = vld [vmem:[%s0 + $0x1] sm:$0x1]
    %v33 = vmul.f32 %v31, 6.25e-05
    %v34 = vmul.f32 %v32, 6.25e-05
    %v35 = vld [vmem:[%s2] sm:$0xff]
    %v36 = vld [vmem:[%s2 + $0x8] sm:$0xff]
    %v37 = vld [vmem:[%s2 + $0x10] sm:$0xff]
    %v38 = vld [vmem:[%s2 + $0x18] sm:$0xff]
    %v39 = vld [vmem:[%s2 + $0x20] sm:$0xff]
    %v40 = vld [vmem:[%s2 + $0x28] sm:$0xff]
    %v41 = vld [vmem:[%s2 + $0x30] sm:$0xff]
    %v42 = vld [vmem:[%s2 + $0x38] sm:$0xff]
    %v43 = vld [vmem:[%s2 + $0x40] sm:$0xff]
    %v44 = vld [vmem:[%s2 + $0x48] sm:$0xff]
    %v45 = vld [vmem:[%s2 + $0x50] sm:$0xff]
    %v46 = vld [vmem:[%s2 + $0x58] sm:$0xff]
    %v47 = vld [vmem:[%s2 + $0x60] sm:$0xff]
    %v48 = vld [vmem:[%s2 + $0x68] sm:$0xff]
    %v49 = vld [vmem:[%s2 + $0x70] sm:$0xff]
    %v50 = vld [vmem:[%s2 + $0x78] sm:$0xff]
    %v53 = vcombine.low %v33, %v34
    %v55 = vunpack.c.l.s4 1966171168
    %v56 = vunpack.c.0.s8 %v55
    %v57 = vlaneseq
    %v58 = vshrl.u32 %v57, 7
    %v59 = vsub.s32 %v56, %v58
    %v60 = vrot.slane %v53, %v59
    %v62 = vunpack.c.l.s4 1966171168
    %v63 = vunpack.c.0.s8 %v62
    %v64 = vlaneseq
    %v65 = vshrl.u32 %v64, 7
    %v66 = vsub.s32 %v63, %v65
    %v67 = vrot.slane %v60, %v66
    %69 = vmatprep.subr.mxu0 0.0
    %v70 = vand.u32 %v35, 4294901760
    %71 = vmatpush1.msra.mxu0 %v70
    %72 = vmatprep.subr.mxu0 0.0
    %v73 = vand.u32 %v36, 4294901760
    %74 = vmatpush1.msra.mxu0 %v73
    %75 = vmatprep.subr.mxu0 0.0
    %v76 = vand.u32 %v37, 4294901760
    %77 = vmatpush1.msra.mxu0 %v76
    %78 = vmatprep.subr.mxu0 0.0
    %v79 = vand.u32 %v38, 4294901760
    %80 = vmatpush1.msra.mxu0 %v79
    %81 = vmatprep.subr.mxu0 0.0
    %v82 = vand.u32 %v39, 4294901760
    %83 = vmatpush1.msra.mxu0 %v82
    %84 = vmatprep.subr.mxu0 0.0
    %v85 = vand.u32 %v40, 4294901760
    %86 = vmatpush1.msra.mxu0 %v85
    %87 = vmatprep.subr.mxu0 0.0
    %v88 = vand.u32 %v41, 4294901760
    %89 = vmatpush1.msra.mxu0 %v88
    %90 = vmatprep.subr.mxu0 0.0
    %v91 = vand.u32 %v42, 4294901760
    %92 = vmatpush1.msra.mxu0 %v91
    %93 = vmatprep.subr.mxu0 0.0
    %v94 = vand.u32 %v43, 4294901760
    %95 = vmatpush1.msra.mxu0 %v94
    %96 = vmatprep.subr.mxu0 0.0
    %v97 = vand.u32 %v44, 4294901760
    %98 = vmatpush1.msra.mxu0 %v97
    %99 = vmatprep.subr.mxu0 0.0
    %v100 = vand.u32 %v45, 4294901760
    %101 = vmatpush1.msra.mxu0 %v100
    %102 = vmatprep.subr.mxu0 0.0
    %v103 = vand.u32 %v46, 4294901760
    %104 = vmatpush1.msra.mxu0 %v103
    %105 = vmatprep.subr.mxu0 0.0
    %v106 = vand.u32 %v47, 4294901760
    %107 = vmatpush1.msra.mxu0 %v106
    %108 = vmatprep.subr.mxu0 0.0
    %v109 = vand.u32 %v48, 4294901760
    %110 = vmatpush1.msra.mxu0 %v109
    %111 = vmatprep.subr.mxu0 0.0
    %v112 = vand.u32 %v49, 4294901760
    %113 = vmatpush1.msra.mxu0 %v112
    %114 = vmatprep.subr.mxu0 0.0
    %v115 = vand.u32 %v50, 4294901760
    %116 = vmatpush1.msra.mxu0 %v115
    %117 = vmatprep.subr.mxu0 0.0
    %118 = vmatpush1.msra.mxu0 0.0
    %119 = vmatprep.subr.mxu0 0.0
    %120 = vmatpush1.msra.mxu0 0.0
    %121 = vmatprep.subr.mxu0 0.0
    %122 = vmatpush1.msra.mxu0 0.0
    %123 = vmatprep.subr.mxu0 0.0
    %124 = vmatpush1.msra.mxu0 0.0
    %125 = vmatprep.subr.mxu0 0.0
    %126 = vmatpush1.msra.mxu0 0.0
    %127 = vmatprep.subr.mxu0 0.0
    %128 = vmatpush1.msra.mxu0 0.0
    %129 = vmatprep.subr.mxu0 0.0
    %130 = vmatpush1.msra.mxu0 0.0
    %131 = vmatprep.subr.mxu0 0.0
    %132 = vmatpush1.msra.mxu0 0.0
    %133 = vmatprep.subr.mxu0 0.0
    %134 = vmatpush1.msra.mxu0 0.0
    %135 = vmatprep.subr.mxu0 0.0
    %136 = vmatpush1.msra.mxu0 0.0
    %137 = vmatprep.subr.mxu0 0.0
    %138 = vmatpush1.msra.mxu0 0.0
    %139 = vmatprep.subr.mxu0 0.0
    %140 = vmatpush1.msra.mxu0 0.0
    %141 = vmatprep.subr.mxu0 0.0
    %142 = vmatpush1.msra.mxu0 0.0
    %143 = vmatprep.subr.mxu0 0.0
    %144 = vmatpush1.msra.mxu0 0.0
    %145 = vmatprep.subr.mxu0 0.0
    %146 = vmatpush1.msra.mxu0 0.0
    %147 = vmatprep.subr.mxu0 0.0
    %148 = vmatpush1.msra.mxu0 0.0
    %149 = vmatprep.mubr.f32.mxu0 0.0
    %v150 = vand.u32 %v67, 4294901760
    %v151 = vsub.f32 %v67, %v150
    %v152 = vand.u32 %v151, 4294901760
    %v153 = vsub.f32 %v151, %v152
    %v154 = vand.u32 %v153, 4294901760
    %155 = vmatmul.mubr.f32.gmra.mrb[0].mxu0 %v154
    %v156 = vpop.f32.mrb[0].mxu0
    %v157 = vadd.f32 0.0, %v156
    %v158 = vpop.f32.mrb[0].mxu0
    %159 = vdwg.mxu0
    %160 = vmatprep.subr.mxu0 0.0
    %v161 = vand.u32 %v35, 4294901760
    %v162 = vsub.f32 %v35, %v161
    %v163 = vand.u32 %v162, 4294901760
    %v164 = vsub.f32 %v162, %v163
    %v165 = vand.u32 %v164, 4294901760
    %166 = vmatpush1.msra.mxu0 %v165
    %167 = vmatprep.subr.mxu0 0.0
    %v168 = vand.u32 %v36, 4294901760
    %v169 = vsub.f32 %v36, %v168
    %v170 = vand.u32 %v169, 4294901760
    %v171 = vsub.f32 %v169, %v170
    %v172 = vand.u32 %v171, 4294901760
    %173 = vmatpush1.msra.mxu0 %v172
    %174 = vmatprep.subr.mxu0 0.0
    %v175 = vand.u32 %v37, 4294901760
    %v176 = vsub.f32 %v37, %v175
    %v177 = vand.u32 %v176, 4294901760
    %v178 = vsub.f32 %v176, %v177
    %v179 = vand.u32 %v178, 4294901760
    %180 = vmatpush1.msra.mxu0 %v179
    %181 = vmatprep.subr.mxu0 0.0
    %v182 = vand.u32 %v38, 4294901760
    %v183 = vsub.f32 %v38, %v182
    %v184 = vand.u32 %v183, 4294901760
    %v185 = vsub.f32 %v183, %v184
    %v186 = vand.u32 %v185, 4294901760
    %187 = vmatpush1.msra.mxu0 %v186
    %188 = vmatprep.subr.mxu0 0.0
    %v189 = vand.u32 %v39, 4294901760
    %v190 = vsub.f32 %v39, %v189
    %v191 = vand.u32 %v190, 4294901760
    %v192 = vsub.f32 %v190, %v191
    %v193 = vand.u32 %v192, 4294901760
    %194 = vmatpush1.msra.mxu0 %v193
    %195 = vmatprep.subr.mxu0 0.0
    %v196 = vand.u32 %v40, 4294901760
    %v197 = vsub.f32 %v40, %v196
    %v198 = vand.u32 %v197, 4294901760
    %v199 = vsub.f32 %v197, %v198
    %v200 = vand.u32 %v199, 4294901760
    %201 = vmatpush1.msra.mxu0 %v200
    %202 = vmatprep.subr.mxu0 0.0
    %v203 = vand.u32 %v41, 4294901760
    %v204 = vsub.f32 %v41, %v203
    %v205 = vand.u32 %v204, 4294901760
    %v206 = vsub.f32 %v204, %v205
    %v207 = vand.u32 %v206, 4294901760
    %208 = vmatpush1.msra.mxu0 %v207
    %209 = vmatprep.subr.mxu0 0.0
    %v210 = vand.u32 %v42, 4294901760
    %v211 = vsub.f32 %v42, %v210
    %v212 = vand.u32 %v211, 4294901760
    %v213 = vsub.f32 %v211, %v212
    %v214 = vand.u32 %v213, 4294901760
    %215 = vmatpush1.msra.mxu0 %v214
    %216 = vmatprep.subr.mxu0 0.0
    %v217 = vand.u32 %v43, 4294901760
    %v218 = vsub.f32 %v43, %v217
    %v219 = vand.u32 %v218, 4294901760
    %v220 = vsub.f32 %v218, %v219
    %v221 = vand.u32 %v220, 4294901760
    %222 = vmatpush1.msra.mxu0 %v221
    %223 = vmatprep.subr.mxu0 0.0
    %v224 = vand.u32 %v44, 4294901760
    %v225 = vsub.f32 %v44, %v224
    %v226 = vand.u32 %v225, 4294901760
    %v227 = vsub.f32 %v225, %v226
    %v228 = vand.u32 %v227, 4294901760
    %229 = vmatpush1.msra.mxu0 %v228
    %230 = vmatprep.subr.mxu0 0.0
    %v231 = vand.u32 %v45, 4294901760
    %v232 = vsub.f32 %v45, %v231
    %v233 = vand.u32 %v232, 4294901760
    %v234 = vsub.f32 %v232, %v233
    %v235 = vand.u32 %v234, 4294901760
    %236 = vmatpush1.msra.mxu0 %v235
    %237 = vmatprep.subr.mxu0 0.0
    %v238 = vand.u32 %v46, 4294901760
    %v239 = vsub.f32 %v46, %v238
    %v240 = vand.u32 %v239, 4294901760
    %v241 = vsub.f32 %v239, %v240
    %v242 = vand.u32 %v241, 4294901760
    %243 = vmatpush1.msra.mxu0 %v242
    %244 = vmatprep.subr.mxu0 0.0
    %v245 = vand.u32 %v47, 4294901760
    %v246 = vsub.f32 %v47, %v245
    %v247 = vand.u32 %v246, 4294901760
    %v248 = vsub.f32 %v246, %v247
    %v249 = vand.u32 %v248, 4294901760
    %250 = vmatpush1.msra.mxu0 %v249
    %251 = vmatprep.subr.mxu0 0.0
    %v252 = vand.u32 %v48, 4294901760
    %v253 = vsub.f32 %v48, %v252
    %v254 = vand.u32 %v253, 4294901760
    %v255 = vsub.f32 %v253, %v254
    %v256 = vand.u32 %v255, 4294901760
    %257 = vmatpush1.msra.mxu0 %v256
    %258 = vmatprep.subr.mxu0 0.0
    %v259 = vand.u32 %v49, 4294901760
    %v260 = vsub.f32 %v49, %v259
    %v261 = vand.u32 %v260, 4294901760
    %v262 = vsub.f32 %v260, %v261
    %v263 = vand.u32 %v262, 4294901760
    %264 = vmatpush1.msra.mxu0 %v263
    %265 = vmatprep.subr.mxu0 0.0
    %v266 = vand.u32 %v50, 4294901760
    %v267 = vsub.f32 %v50, %v266
    %v268 = vand.u32 %v267, 4294901760
    %v269 = vsub.f32 %v267, %v268
    %v270 = vand.u32 %v269, 4294901760
    %271 = vmatpush1.msra.mxu0 %v270
    %272 = vmatprep.subr.mxu0 0.0
    %273 = vmatpush1.msra.mxu0 0.0
    %274 = vmatprep.subr.mxu0 0.0
    %275 = vmatpush1.msra.mxu0 0.0
    %276 = vmatprep.subr.mxu0 0.0
    %277 = vmatpush1.msra.mxu0 0.0
    %278 = vmatprep.subr.mxu0 0.0
    %279 = vmatpush1.msra.mxu0 0.0
    %280 = vmatprep.subr.mxu0 0.0
    %281 = vmatpush1.msra.mxu0 0.0
    %282 = vmatprep.subr.mxu0 0.0
    %283 = vmatpush1.msra.mxu0 0.0
    %284 = vmatprep.subr.mxu0 0.0
    %285 = vmatpush1.msra.mxu0 0.0
    %286 = vmatprep.subr.mxu0 0.0
    %287 = vmatpush1.msra.mxu0 0.0
    %288 = vmatprep.subr.mxu0 0.0
    %289 = vmatpush1.msra.mxu0 0.0
    %290 = vmatprep.subr.mxu0 0.0
    %291 = vmatpush1.msra.mxu0 0.0
    %292 = vmatprep.subr.mxu0 0.0
    %293 = vmatpush1.msra.mxu0 0.0
    %294 = vmatprep.subr.mxu0 0.0
    %295 = vmatpush1.msra.mxu0 0.0
    %296 = vmatprep.subr.mxu0 0.0
    %297 = vmatpush1.msra.mxu0 0.0
    %298 = vmatprep.subr.mxu0 0.0
    %299 = vmatpush1.msra.mxu0 0.0
    %300 = vmatprep.subr.mxu0 0.0
    %301 = vmatpush1.msra.mxu0 0.0
    %302 = vmatprep.subr.mxu0 0.0
    %303 = vmatpush1.msra.mxu0 0.0
    %304 = vmatprep.mubr.f32.mxu0 0.0
    %v305 = vand.u32 %v67, 4294901760
    %306 = vmatmul.mubr.f32.gmra.mrb[0].mxu0 %v305
    %v307 = vpop.f32.mrb[0].mxu0
    %v308 = vadd.f32 %v157, %v307
    %v309 = vpop.f32.mrb[0].mxu0
    %310 = vdwg.mxu0
    %311 = vmatprep.subr.mxu0 0.0
    %v312 = vand.u32 %v35, 4294901760
    %v313 = vsub.f32 %v35, %v312
    %314 = vmatpush1.msra.mxu0 %v313
    %315 = vmatprep.subr.mxu0 0.0
    %v316 = vand.u32 %v36, 4294901760
    %v317 = vsub.f32 %v36, %v316
    %318 = vmatpush1.msra.mxu0 %v317
    %319 = vmatprep.subr.mxu0 0.0
    %v320 = vand.u32 %v37, 4294901760
    %v321 = vsub.f32 %v37, %v320
    %322 = vmatpush1.msra.mxu0 %v321
    %323 = vmatprep.subr.mxu0 0.0
    %v324 = vand.u32 %v38, 4294901760
    %v325 = vsub.f32 %v38, %v324
    %326 = vmatpush1.msra.mxu0 %v325
    %327 = vmatprep.subr.mxu0 0.0
    %v328 = vand.u32 %v39, 4294901760
    %v329 = vsub.f32 %v39, %v328
    %330 = vmatpush1.msra.mxu0 %v329
    %331 = vmatprep.subr.mxu0 0.0
    %v332 = vand.u32 %v40, 4294901760
    %v333 = vsub.f32 %v40, %v332
    %334 = vmatpush1.msra.mxu0 %v333
    %335 = vmatprep.subr.mxu0 0.0
    %v336 = vand.u32 %v41, 4294901760
    %v337 = vsub.f32 %v41, %v336
    %338 = vmatpush1.msra.mxu0 %v337
    %339 = vmatprep.subr.mxu0 0.0
    %v340 = vand.u32 %v42, 4294901760
    %v341 = vsub.f32 %v42, %v340
    %342 = vmatpush1.msra.mxu0 %v341
    %343 = vmatprep.subr.mxu0 0.0
    %v344 = vand.u32 %v43, 4294901760
    %v345 = vsub.f32 %v43, %v344
    %346 = vmatpush1.msra.mxu0 %v345
    %347 = vmatprep.subr.mxu0 0.0
    %v348 = vand.u32 %v44, 4294901760
    %v349 = vsub.f32 %v44, %v348
    %350 = vmatpush1.msra.mxu0 %v349
    %351 = vmatprep.subr.mxu0 0.0
    %v352 = vand.u32 %v45, 4294901760
    %v353 = vsub.f32 %v45, %v352
    %354 = vmatpush1.msra.mxu0 %v353
    %355 = vmatprep.subr.mxu0 0.0
    %v356 = vand.u32 %v46, 4294901760
    %v357 = vsub.f32 %v46, %v356
    %358 = vmatpush1.msra.mxu0 %v357
    %359 = vmatprep.subr.mxu0 0.0
    %v360 = vand.u32 %v47, 4294901760
    %v361 = vsub.f32 %v47, %v360
    %362 = vmatpush1.msra.mxu0 %v361
    %363 = vmatprep.subr.mxu0 0.0
    %v364 = vand.u32 %v48, 4294901760
    %v365 = vsub.f32 %v48, %v364
    %366 = vmatpush1.msra.mxu0 %v365
    %367 = vmatprep.subr.mxu0 0.0
    %v368 = vand.u32 %v49, 4294901760
    %v369 = vsub.f32 %v49, %v368
    %370 = vmatpush1.msra.mxu0 %v369
    %371 = vmatprep.subr.mxu0 0.0
    %v372 = vand.u32 %v50, 4294901760
    %v373 = vsub.f32 %v50, %v372
    %374 = vmatpush1.msra.mxu0 %v373
    %375 = vmatprep.subr.mxu0 0.0
    %376 = vmatpush1.msra.mxu0 0.0
    %377 = vmatprep.subr.mxu0 0.0
    %378 = vmatpush1.msra.mxu0 0.0
    %379 = vmatprep.subr.mxu0 0.0
    %380 = vmatpush1.msra.mxu0 0.0
    %381 = vmatprep.subr.mxu0 0.0
    %382 = vmatpush1.msra.mxu0 0.0
    %383 = vmatprep.subr.mxu0 0.0
    %384 = vmatpush1.msra.mxu0 0.0
    %385 = vmatprep.subr.mxu0 0.0
    %386 = vmatpush1.msra.mxu0 0.0
    %387 = vmatprep.subr.mxu0 0.0
    %388 = vmatpush1.msra.mxu0 0.0
    %389 = vmatprep.subr.mxu0 0.0
    %390 = vmatpush1.msra.mxu0 0.0
    %391 = vmatprep.subr.mxu0 0.0
    %392 = vmatpush1.msra.mxu0 0.0
    %393 = vmatprep.subr.mxu0 0.0
    %394 = vmatpush1.msra.mxu0 0.0
    %395 = vmatprep.subr.mxu0 0.0
    %396 = vmatpush1.msra.mxu0 0.0
    %397 = vmatprep.subr.mxu0 0.0
    %398 = vmatpush1.msra.mxu0 0.0
    %399 = vmatprep.subr.mxu0 0.0
    %400 = vmatpush1.msra.mxu0 0.0
    %401 = vmatprep.subr.mxu0 0.0
    %402 = vmatpush1.msra.mxu0 0.0
    %403 = vmatprep.subr.mxu0 0.0
    %404 = vmatpush1.msra.mxu0 0.0
    %405 = vmatprep.subr.mxu0 0.0
    %406 = vmatpush1.msra.mxu0 0.0
    %407 = vmatprep.mubr.f32.mxu0 0.0
    %v408 = vand.u32 %v67, 4294901760
    %v409 = vsub.f32 %v67, %v408
    %410 = vmatmul.mubr.f32.gmra.mrb[0].mxu0 %v409
    %v411 = vpop.f32.mrb[0].mxu0
    %v412 = vadd.f32 %v308, %v411
    %v413 = vpop.f32.mrb[0].mxu0
    %414 = vdwg.mxu0
    %415 = vmatprep.subr.mxu0 0.0
    %v416 = vand.u32 %v35, 4294901760
    %417 = vmatpush1.msra.mxu0 %v416
    %418 = vmatprep.subr.mxu0 0.0
    %v419 = vand.u32 %v36, 4294901760
    %420 = vmatpush1.msra.mxu0 %v419
    %421 = vmatprep.subr.mxu0 0.0
    %v422 = vand.u32 %v37, 4294901760
    %423 = vmatpush1.msra.mxu0 %v422
    %424 = vmatprep.subr.mxu0 0.0
    %v425 = vand.u32 %v38, 4294901760
    %426 = vmatpush1.msra.mxu0 %v425
    %427 = vmatprep.subr.mxu0 0.0
    %v428 = vand.u32 %v39, 4294901760
    %429 = vmatpush1.msra.mxu0 %v428
    %430 = vmatprep.subr.mxu0 0.0
    %v431 = vand.u32 %v40, 4294901760
    %432 = vmatpush1.msra.mxu0 %v431
    %433 = vmatprep.subr.mxu0 0.0
    %v434 = vand.u32 %v41, 4294901760
    %435 = vmatpush1.msra.mxu0 %v434
    %436 = vmatprep.subr.mxu0 0.0
    %v437 = vand.u32 %v42, 4294901760
    %438 = vmatpush1.msra.mxu0 %v437
    %439 = vmatprep.subr.mxu0 0.0
    %v440 = vand.u32 %v43, 4294901760
    %441 = vmatpush1.msra.mxu0 %v440
    %442 = vmatprep.subr.mxu0 0.0
    %v443 = vand.u32 %v44, 4294901760
    %444 = vmatpush1.msra.mxu0 %v443
    %445 = vmatprep.subr.mxu0 0.0
    %v446 = vand.u32 %v45, 4294901760
    %447 = vmatpush1.msra.mxu0 %v446
    %448 = vmatprep.subr.mxu0 0.0
    %v449 = vand.u32 %v46, 4294901760
    %450 = vmatpush1.msra.mxu0 %v449
    %451 = vmatprep.subr.mxu0 0.0
    %v452 = vand.u32 %v47, 4294901760
    %453 = vmatpush1.msra.mxu0 %v452
    %454 = vmatprep.subr.mxu0 0.0
    %v455 = vand.u32 %v48, 4294901760
    %456 = vmatpush1.msra.mxu0 %v455
    %457 = vmatprep.subr.mxu0 0.0
    %v458 = vand.u32 %v49, 4294901760
    %459 = vmatpush1.msra.mxu0 %v458
    %460 = vmatprep.subr.mxu0 0.0
    %v461 = vand.u32 %v50, 4294901760
    %462 = vmatpush1.msra.mxu0 %v461
    %463 = vmatprep.subr.mxu0 0.0
    %464 = vmatpush1.msra.mxu0 0.0
    %465 = vmatprep.subr.mxu0 0.0
    %466 = vmatpush1.msra.mxu0 0.0
    %467 = vmatprep.subr.mxu0 0.0
    %468 = vmatpush1.msra.mxu0 0.0
    %469 = vmatprep.subr.mxu0 0.0
    %470 = vmatpush1.msra.mxu0 0.0
    %471 = vmatprep.subr.mxu0 0.0
    %472 = vmatpush1.msra.mxu0 0.0
    %473 = vmatprep.subr.mxu0 0.0
    %474 = vmatpush1.msra.mxu0 0.0
    %475 = vmatprep.subr.mxu0 0.0
    %476 = vmatpush1.msra.mxu0 0.0
    %477 = vmatprep.subr.mxu0 0.0
    %478 = vmatpush1.msra.mxu0 0.0
    %479 = vmatprep.subr.mxu0 0.0
    %480 = vmatpush1.msra.mxu0 0.0
    %481 = vmatprep.subr.mxu0 0.0
    %482 = vmatpush1.msra.mxu0 0.0
    %483 = vmatprep.subr.mxu0 0.0
    %484 = vmatpush1.msra.mxu0 0.0
    %485 = vmatprep.subr.mxu0 0.0
    %486 = vmatpush1.msra.mxu0 0.0
    %487 = vmatprep.subr.mxu0 0.0
    %488 = vmatpush1.msra.mxu0 0.0
    %489 = vmatprep.subr.mxu0 0.0
    %490 = vmatpush1.msra.mxu0 0.0
    %491 = vmatprep.subr.mxu0 0.0
    %492 = vmatpush1.msra.mxu0 0.0
    %493 = vmatprep.subr.mxu0 0.0
    %494 = vmatpush1.msra.mxu0 0.0
    %495 = vmatprep.mubr.f32.mxu0 0.0
    %v496 = vand.u32 %v67, 4294901760
    %v497 = vsub.f32 %v67, %v496
    %v498 = vand.u32 %v497, 4294901760
    %499 = vmatmul.mubr.f32.gmra.mrb[0].mxu0 %v498
    %v500 = vpop.f32.mrb[0].mxu0
    %v501 = vadd.f32 %v412, %v500
    %v502 = vpop.f32.mrb[0].mxu0
    %503 = vdwg.mxu0
    %504 = vmatprep.subr.mxu0 0.0
    %v505 = vand.u32 %v35, 4294901760
    %v506 = vsub.f32 %v35, %v505
    %v507 = vand.u32 %v506, 4294901760
    %508 = vmatpush1.msra.mxu0 %v507
    %509 = vmatprep.subr.mxu0 0.0
    %v510 = vand.u32 %v36, 4294901760
    %v511 = vsub.f32 %v36, %v510
    %v512 = vand.u32 %v511, 4294901760
    %513 = vmatpush1.msra.mxu0 %v512
    %514 = vmatprep.subr.mxu0 0.0
    %v515 = vand.u32 %v37, 4294901760
    %v516 = vsub.f32 %v37, %v515
    %v517 = vand.u32 %v516, 4294901760
    %518 = vmatpush1.msra.mxu0 %v517
    %519 = vmatprep.subr.mxu0 0.0
    %v520 = vand.u32 %v38, 4294901760
    %v521 = vsub.f32 %v38, %v520
    %v522 = vand.u32 %v521, 4294901760
    %523 = vmatpush1.msra.mxu0 %v522
    %524 = vmatprep.subr.mxu0 0.0
    %v525 = vand.u32 %v39, 4294901760
    %v526 = vsub.f32 %v39, %v525
    %v527 = vand.u32 %v526, 4294901760
    %528 = vmatpush1.msra.mxu0 %v527
    %529 = vmatprep.subr.mxu0 0.0
    %v530 = vand.u32 %v40, 4294901760
    %v531 = vsub.f32 %v40, %v530
    %v532 = vand.u32 %v531, 4294901760
    %533 = vmatpush1.msra.mxu0 %v532
    %534 = vmatprep.subr.mxu0 0.0
    %v535 = vand.u32 %v41, 4294901760
    %v536 = vsub.f32 %v41, %v535
    %v537 = vand.u32 %v536, 4294901760
    %538 = vmatpush1.msra.mxu0 %v537
    %539 = vmatprep.subr.mxu0 0.0
    %v540 = vand.u32 %v42, 4294901760
    %v541 = vsub.f32 %v42, %v540
    %v542 = vand.u32 %v541, 4294901760
    %543 = vmatpush1.msra.mxu0 %v542
    %544 = vmatprep.subr.mxu0 0.0
    %v545 = vand.u32 %v43, 4294901760
    %v546 = vsub.f32 %v43, %v545
    %v547 = vand.u32 %v546, 4294901760
    %548 = vmatpush1.msra.mxu0 %v547
    %549 = vmatprep.subr.mxu0 0.0
    %v550 = vand.u32 %v44, 4294901760
    %v551 = vsub.f32 %v44, %v550
    %v552 = vand.u32 %v551, 4294901760
    %553 = vmatpush1.msra.mxu0 %v552
    %554 = vmatprep.subr.mxu0 0.0
    %v555 = vand.u32 %v45, 4294901760
    %v556 = vsub.f32 %v45, %v555
    %v557 = vand.u32 %v556, 4294901760
    %558 = vmatpush1.msra.mxu0 %v557
    %559 = vmatprep.subr.mxu0 0.0
    %v560 = vand.u32 %v46, 4294901760
    %v561 = vsub.f32 %v46, %v560
    %v562 = vand.u32 %v561, 4294901760
    %563 = vmatpush1.msra.mxu0 %v562
    %564 = vmatprep.subr.mxu0 0.0
    %v565 = vand.u32 %v47, 4294901760
    %v566 = vsub.f32 %v47, %v565
    %v567 = vand.u32 %v566, 4294901760
    %568 = vmatpush1.msra.mxu0 %v567
    %569 = vmatprep.subr.mxu0 0.0
    %v570 = vand.u32 %v48, 4294901760
    %v571 = vsub.f32 %v48, %v570
    %v572 = vand.u32 %v571, 4294901760
    %573 = vmatpush1.msra.mxu0 %v572
    %574 = vmatprep.subr.mxu0 0.0
    %v575 = vand.u32 %v49, 4294901760
    %v576 = vsub.f32 %v49, %v575
    %v577 = vand.u32 %v576, 4294901760
    %578 = vmatpush1.msra.mxu0 %v577
    %579 = vmatprep.subr.mxu0 0.0
    %v580 = vand.u32 %v50, 4294901760
    %v581 = vsub.f32 %v50, %v580
    %v582 = vand.u32 %v581, 4294901760
    %583 = vmatpush1.msra.mxu0 %v582
    %584 = vmatprep.subr.mxu0 0.0
    %585 = vmatpush1.msra.mxu0 0.0
    %586 = vmatprep.subr.mxu0 0.0
    %587 = vmatpush1.msra.mxu0 0.0
    %588 = vmatprep.subr.mxu0 0.0
    %589 = vmatpush1.msra.mxu0 0.0
    %590 = vmatprep.subr.mxu0 0.0
    %591 = vmatpush1.msra.mxu0 0.0
    %592 = vmatprep.subr.mxu0 0.0
    %593 = vmatpush1.msra.mxu0 0.0
    %594 = vmatprep.subr.mxu0 0.0
    %595 = vmatpush1.msra.mxu0 0.0
    %596 = vmatprep.subr.mxu0 0.0
    %597 = vmatpush1.msra.mxu0 0.0
    %598 = vmatprep.subr.mxu0 0.0
    %599 = vmatpush1.msra.mxu0 0.0
    %600 = vmatprep.subr.mxu0 0.0
    %601 = vmatpush1.msra.mxu0 0.0
    %602 = vmatprep.subr.mxu0 0.0
    %603 = vmatpush1.msra.mxu0 0.0
    %604 = vmatprep.subr.mxu0 0.0
    %605 = vmatpush1.msra.mxu0 0.0
    %606 = vmatprep.subr.mxu0 0.0
    %607 = vmatpush1.msra.mxu0 0.0
    %608 = vmatprep.subr.mxu0 0.0
    %609 = vmatpush1.msra.mxu0 0.0
    %610 = vmatprep.subr.mxu0 0.0
    %611 = vmatpush1.msra.mxu0 0.0
    %612 = vmatprep.subr.mxu0 0.0
    %613 = vmatpush1.msra.mxu0 0.0
    %614 = vmatprep.subr.mxu0 0.0
    %615 = vmatpush1.msra.mxu0 0.0
    %616 = vmatprep.mubr.f32.mxu0 0.0
    %v617 = vand.u32 %v67, 4294901760
    %618 = vmatmul.mubr.f32.gmra.mrb[0].mxu0 %v617
    %v619 = vpop.f32.mrb[0].mxu0
    %v620 = vadd.f32 %v501, %v619
    %v621 = vpop.f32.mrb[0].mxu0
    %622 = vdwg.mxu0
    %623 = vmatprep.subr.mxu0 0.0
    %v624 = vand.u32 %v35, 4294901760
    %625 = vmatpush1.msra.mxu0 %v624
    %626 = vmatprep.subr.mxu0 0.0
    %v627 = vand.u32 %v36, 4294901760
    %628 = vmatpush1.msra.mxu0 %v627
    %629 = vmatprep.subr.mxu0 0.0
    %v630 = vand.u32 %v37, 4294901760
    %631 = vmatpush1.msra.mxu0 %v630
    %632 = vmatprep.subr.mxu0 0.0
    %v633 = vand.u32 %v38, 4294901760
    %634 = vmatpush1.msra.mxu0 %v633
    %635 = vmatprep.subr.mxu0 0.0
    %v636 = vand.u32 %v39, 4294901760
    %637 = vmatpush1.msra.mxu0 %v636
    %638 = vmatprep.subr.mxu0 0.0
    %v639 = vand.u32 %v40, 4294901760
    %640 = vmatpush1.msra.mxu0 %v639
    %641 = vmatprep.subr.mxu0 0.0
    %v642 = vand.u32 %v41, 4294901760
    %643 = vmatpush1.msra.mxu0 %v642
    %644 = vmatprep.subr.mxu0 0.0
    %v645 = vand.u32 %v42, 4294901760
    %646 = vmatpush1.msra.mxu0 %v645
    %647 = vmatprep.subr.mxu0 0.0
    %v648 = vand.u32 %v43, 4294901760
    %649 = vmatpush1.msra.mxu0 %v648
    %650 = vmatprep.subr.mxu0 0.0
    %v651 = vand.u32 %v44, 4294901760
    %652 = vmatpush1.msra.mxu0 %v651
    %653 = vmatprep.subr.mxu0 0.0
    %v654 = vand.u32 %v45, 4294901760
    %655 = vmatpush1.msra.mxu0 %v654
    %656 = vmatprep.subr.mxu0 0.0
    %v657 = vand.u32 %v46, 4294901760
    %658 = vmatpush1.msra.mxu0 %v657
    %659 = vmatprep.subr.mxu0 0.0
    %v660 = vand.u32 %v47, 4294901760
    %661 = vmatpush1.msra.mxu0 %v660
    %662 = vmatprep.subr.mxu0 0.0
    %v663 = vand.u32 %v48, 4294901760
    %664 = vmatpush1.msra.mxu0 %v663
    %665 = vmatprep.subr.mxu0 0.0
    %v666 = vand.u32 %v49, 4294901760
    %667 = vmatpush1.msra.mxu0 %v666
    %668 = vmatprep.subr.mxu0 0.0
    %v669 = vand.u32 %v50, 4294901760
    %670 = vmatpush1.msra.mxu0 %v669
    %671 = vmatprep.subr.mxu0 0.0
    %672 = vmatpush1.msra.mxu0 0.0
    %673 = vmatprep.subr.mxu0 0.0
    %674 = vmatpush1.msra.mxu0 0.0
    %675 = vmatprep.subr.mxu0 0.0
    %676 = vmatpush1.msra.mxu0 0.0
    %677 = vmatprep.subr.mxu0 0.0
    %678 = vmatpush1.msra.mxu0 0.0
    %679 = vmatprep.subr.mxu0 0.0
    %680 = vmatpush1.msra.mxu0 0.0
    %681 = vmatprep.subr.mxu0 0.0
    %682 = vmatpush1.msra.mxu0 0.0
    %683 = vmatprep.subr.mxu0 0.0
    %684 = vmatpush1.msra.mxu0 0.0
    %685 = vmatprep.subr.mxu0 0.0
    %686 = vmatpush1.msra.mxu0 0.0
    %687 = vmatprep.subr.mxu0 0.0
    %688 = vmatpush1.msra.mxu0 0.0
    %689 = vmatprep.subr.mxu0 0.0
    %690 = vmatpush1.msra.mxu0 0.0
    %691 = vmatprep.subr.mxu0 0.0
    %692 = vmatpush1.msra.mxu0 0.0
    %693 = vmatprep.subr.mxu0 0.0
    %694 = vmatpush1.msra.mxu0 0.0
    %695 = vmatprep.subr.mxu0 0.0
    %696 = vmatpush1.msra.mxu0 0.0
    %697 = vmatprep.subr.mxu0 0.0
    %698 = vmatpush1.msra.mxu0 0.0
    %699 = vmatprep.subr.mxu0 0.0
    %700 = vmatpush1.msra.mxu0 0.0
    %701 = vmatprep.subr.mxu0 0.0
    %702 = vmatpush1.msra.mxu0 0.0
    %703 = vmatprep.mubr.f32.mxu0 0.0
    %v704 = vand.u32 %v67, 4294901760
    %705 = vmatmul.mubr.f32.gmra.mrb[0].mxu0 %v704
    %v706 = vpop.f32.mrb[0].mxu0
    %v707 = vadd.f32 %v620, %v706
    %v708 = vpop.f32.mrb[0].mxu0
    %709 = vdwg.mxu0
    %v712 = vunpack.c.l.s4 1966171168
    %v713 = vunpack.c.0.s8 %v712
    %v714 = vlaneseq
    %v715 = vshrl.u32 %v714, 7
    %v716 = vsub.s32 %v713, %v715
    %v717 = vrot.slane %v707, %v716
    %v718 = vcombine.high %v717, %v717
    %v720 = vunpack.c.l.s4 1966171168
    %v721 = vunpack.c.0.s8 %v720
    %v722 = vlaneseq
    %v723 = vshrl.u32 %v722, 7
    %v724 = vsub.s32 %v721, %v723
    %v725 = vrot.slane %v717, %v724
    %v727 = vunpack.c.l.s4 1966171168
    %v728 = vunpack.c.0.s8 %v727
    %v729 = vlaneseq
    %v730 = vshrl.u32 %v729, 7
    %v731 = vsub.s32 %v728, %v730
    %v732 = vrot.slane %v718, %v731
    %vm735 = vcmask 1040384
    %v736 = vsel %vm735, %v33, 0.0
    %737 = vadd.xlane.f32.xlu0 %v736
    %v738 = vpop.xlane.xlu0 %737
    %v739 = vsel %vm735, %v34, 0.0
    %740 = vadd.xlane.f32.xlu0 %v739
    %v741 = vpop.xlane.xlu0 %740
    %v742 = vld [vmem:[#allocation2] sm:$0x3]
    %v743 = vadd.f32 %v725, 0.0
    %v744 = vadd.f32 %v732, 0.0
    %v747 = vunpack.c.l.s4 1966171168
    %v748 = vunpack.c.0.s8 %v747
    %v749 = vlaneseq
    %v750 = vshrl.u32 %v749, 7
    %v751 = vsub.s32 %v748, %v750
    %v752 = vrot.slane %v742, %v751
    %v753 = vcombine.high %v752, %v752
    %v755 = vunpack.c.l.s4 1966171168
    %v756 = vunpack.c.0.s8 %v755
    %v757 = vlaneseq
    %v758 = vshrl.u32 %v757, 7
    %v759 = vsub.s32 %v756, %v758
    %v760 = vrot.slane %v752, %v759
    %v762 = vunpack.c.l.s4 1966171168
    %v763 = vunpack.c.0.s8 %v762
    %v764 = vlaneseq
    %v765 = vshrl.u32 %v764, 7
    %v766 = vsub.s32 %v763, %v765
    %v767 = vrot.slane %v753, %v766
    %768 = vset.pattern.permute.xlu0 0
    %769 = vperm.xlu0 %768, %v760
    %v770 = vpop.permute.xlu0 %769
    %v772 = vlaneseq
    %v773 = vshrl.u32 %v772, 7
    %v774 = vsub.s32 0, %v773
    %v775 = vrot.slane %v770, %v774
    %776 = vset.pattern.permute.xlu0 0
    %777 = vperm.xlu0 %776, %v767
    %v778 = vpop.permute.xlu0 %777
    %v780 = vlaneseq
    %v781 = vshrl.u32 %v780, 7
    %v782 = vsub.s32 0, %v781
    %v783 = vrot.slane %v778, %v782
    %v784 = vadd.f32 %v743, %v775
    %v785 = vadd.f32 %v744, %v783
    %v786 = vadd.f32 %v738, 0.0
    %v787 = vadd.f32 %v741, 0.0
    %v790 = vrot.slane %v787, 7
    %vm791 = vcmask 1041409
    %v792 = vsel %vm791, %v790, %v786
    %v794 = vadd.f32 %v742, %v792
    %v795 = vround.ne.pseudo %v794
    %v796 = vsub.f32 %v794, %v795
    %vm797 = vcmask 1024
    %798 = vst.msk [vmem:[#allocation2] sm:$0x3] %vm797, %v796
    %v799 = vround.ne.pseudo %v784
    %v800 = vround.ne.pseudo %v785
    %v801 = vsub.f32 %v784, %v799
    %v802 = vsub.f32 %v785, %v800
    %v803 = vadd.f32 %v31, 0.001
    %v804 = vadd.f32 %v32, 0.001
    %v805 = vrcp.pop %v803
    %v806 = vrcp.pop %v804
    %v807 = vmul.f32 %v801, 16000.0
    %v808 = vmul.f32 %v802, 16000.0
    %v809 = vmul.f32 %v807, %v805
    %v810 = vmul.f32 %v808, %v806
    %v811 = vmul.f32 %v809, 3.1415927
    %v812 = vmul.f32 %v810, 3.1415927
    %v813 = vand.u32 2147483647, %v809
    %v814 = vand.u32 2147483647, %v810
    %vm815 = vcmp.lt.f32.partialorder %v813, 1e-06
    %vm816 = vcmp.lt.f32.partialorder %v814, 1e-06
    %v817 = vand.u32 2147483647, %v811
    %vm818 = vcmp.le.f32.partialorder %v817, 0.7853982
    %vm819 = vcmp.lt.s32.totalorder %v811, 0
    %v820 = vand.u32 %v811, 2139095040
    %v821 = vshrl.u32 %v820, 23
    %v822 = vsub.s32 %v821, 127
    %v823 = vand.u32 2147483647, %v811
    %v824 = vand.u32 %v823, 8388607
    %v825 = vor.u32 %v824, 8388608
    %v826 = vsub.s32 0, %v825
    %v827 = vadd.s32 %v822, 1
    %vm828 = vcmp.gt.s32.totalorder %v827, 0
    %v829 = vsel %vm828, %v827, 0
    %v830 = vshrl.u32 %v829, 5
    %v831 = vand.u32 %v829, 31
    %v832 = vsub.s32 32, %v831
    %v833 = vshrl.u32 683565275, %v832
    %v834 = vshll.u32 683565275, %v831
    %v835 = vshrl.u32 2475754826, %v832
    %v836 = vor.u32 %v834, %v835
    %v837 = vshll.u32 2475754826, %v831
    %v838 = vshrl.u32 2131351028, %v832
    %v839 = vor.u32 %v837, %v838
    %v840 = vshll.u32 2131351028, %v831
    %v841 = vshrl.u32 2102212464, %v832
    %v842 = vor.u32 %v840, %v841
    %v843 = vshll.u32 2102212464, %v831
    %v844 = vshrl.u32 920167782, %v832
    %v845 = vor.u32 %v843, %v844
    %v846 = vshll.u32 920167782, %v831
    %v847 = vshrl.u32 1326507024, %v832
    %v848 = vor.u32 %v846, %v847
    %vm849 = vcmp.lt.s32.totalorder %v830, 1
    %vm850 = vcmp.lt.s32.totalorder %v830, 2
    %vm851 = vcmp.lt.s32.totalorder %v830, 3
    %vm852 = vcmp.lt.s32.totalorder %v830, 4
    %v853 = vsel %vm849, %v833, %v836
    %v854 = vsel %vm852, %v842, 2102212464
    %v855 = vsel %vm851, %v839, %v854
    %v856 = vsel %vm850, %v853, %v855
    %v857 = vsel %vm849, %v836, %v839
    %v858 = vsel %vm852, %v845, 920167782
    %v859 = vsel %vm851, %v842, %v858
    %v860 = vsel %vm850, %v857, %v859
    %v861 = vsel %vm849, %v839, %v842
    %v862 = vsel %vm852, %v848, 1326507024
    %v863 = vsel %vm851, %v845, %v862
    %v864 = vsel %vm850, %v861, %v863
    %v865 = vshll.u32 %v825, 8
    %v866 = vmul.u32.u64.compose %v865, %v864
    %v867 = vextract.low.u32 %v866
    %v868 = vextract.high.u32 %v866
    %v869 = vmul.u32.u64.compose %v865, %v860
    %v870 = vextract.low.u32 %v869
    %v871 = vextract.high.u32 %v869
    %v872 = vmul.u32 %v865, %v856
    %v873 = vadd.s32 %v868, %v870
    %vm874 = vc.u32 %v868, %v870
    %v875 = vadd.s32 %v871, 1
    %v876 = vsel %vm874, %v875, %v871
    %v877 = vadd.s32 %v872, %v876
    %v878 = vadd.s32 %v877, 536870912
    %v879 = vshrl.u32 %v878, 30
    %v880 = vshll.u32 %v879, 30
    %v881 = vsub.s32 %v877, %v880
    %vm882 = vcmp.lt.s32.totalorder %v881, 0
    %v883 = vsub.s32 0, %v881
    %v884 = vsel %vm882, %v883, %v881
    %v885 = vclz %v884
    %v886 = vsub.s32 %v885, 2
    %vm887 = vcmp.gt.s32.totalorder 0, %v886
    %v888 = vsel %vm887, 0, %v886
    %v889 = vsub.s32 32, %v888
    %v890 = vshll.u32 %v881, %v888
    %v891 = vshrl.u32 %v873, %v889
    %v892 = vor.u32 %v890, %v891
    %v893 = vsub.s32 4294967266, %v888
    %v894 = vadd.s32 %v893, 127
    %v895 = vshll.u32 %v894, 23
    %v896 = vor.u32 4788187, %v895
    %v897 = vand.u32 2147483647, %v896
    %v899 = vcvt.s32.f32 %v892
    %v900 = vmul.f32 %v899, %v897
    %v901 = vxor.u32 %v900, 2147483648
    %v902 = vsel %vm819, %v901, %v900
    %v903 = vsub.s32 4, %v879
    %v904 = vsel %vm819, %v903, %v879
    %v905 = vsel %vm818, %v811, %v902
    %v906 = vsel %vm818, 0, %v904
    %v907 = vcosq.f32.pop %v905
    %v908 = vsinq.f32.pop %v905
    %vm909 = vweird.f32 %v811
    %v910 = vadd.s32 %v906, 3
    %v911 = vand.u32 %v910, 3
    %vm912 = vcmp.lt.s32.totalorder %v911, 2
    %vm913 = vcmp.eq.s32.totalorder %v911, 0
    %v914 = vxor.u32 %v908, 2147483648
    %v915 = vsel %vm913, %v907, %v914
    %vm916 = vcmp.eq.s32.totalorder %v911, 2
    %v917 = vxor.u32 %v907, 2147483648
    %v918 = vsel %vm916, %v917, %v908
    %v919 = vsel %vm912, %v915, %v918
    %v920 = vsel %vm909, nan, %v919
    %v921 = vand.u32 2147483647, %v812
    %vm922 = vcmp.le.f32.partialorder %v921, 0.7853982
    %vm923 = vcmp.lt.s32.totalorder %v812, 0
    %v924 = vand.u32 %v812, 2139095040
    %v925 = vshrl.u32 %v924, 23
    %v926 = vsub.s32 %v925, 127
    %v927 = vand.u32 2147483647, %v812
    %v928 = vand.u32 %v927, 8388607
    %v929 = vor.u32 %v928, 8388608
    %v930 = vsub.s32 0, %v929
    %v931 = vadd.s32 %v926, 1
    %vm932 = vcmp.gt.s32.totalorder %v931, 0
    %v933 = vsel %vm932, %v931, 0
    %v934 = vshrl.u32 %v933, 5
    %v935 = vand.u32 %v933, 31
    %v936 = vsub.s32 32, %v935
    %v937 = vshrl.u32 683565275, %v936
    %v938 = vshll.u32 683565275, %v935
    %v939 = vshrl.u32 2475754826, %v936
    %v940 = vor.u32 %v938, %v939
    %v941 = vshll.u32 2475754826, %v935
    %v942 = vshrl.u32 2131351028, %v936
    %v943 = vor.u32 %v941, %v942
    %v944 = vshll.u32 2131351028, %v935
    %v945 = vshrl.u32 2102212464, %v936
    %v946 = vor.u32 %v944, %v945
    %v947 = vshll.u32 2102212464, %v935
    %v948 = vshrl.u32 920167782, %v936
    %v949 = vor.u32 %v947, %v948
    %v950 = vshll.u32 920167782, %v935
    %v951 = vshrl.u32 1326507024, %v936
    %v952 = vor.u32 %v950, %v951
    %vm953 = vcmp.lt.s32.totalorder %v934, 1
    %vm954 = vcmp.lt.s32.totalorder %v934, 2
    %vm955 = vcmp.lt.s32.totalorder %v934, 3
    %vm956 = vcmp.lt.s32.totalorder %v934, 4
    %v957 = vsel %vm953, %v937, %v940
    %v958 = vsel %vm956, %v946, 2102212464
    %v959 = vsel %vm955, %v943, %v958
    %v960 = vsel %vm954, %v957, %v959
    %v961 = vsel %vm953, %v940, %v943
    %v962 = vsel %vm956, %v949, 920167782
    %v963 = vsel %vm955, %v946, %v962
    %v964 = vsel %vm954, %v961, %v963
    %v965 = vsel %vm953, %v943, %v946
    %v966 = vsel %vm956, %v952, 1326507024
    %v967 = vsel %vm955, %v949, %v966
    %v968 = vsel %vm954, %v965, %v967
    %v969 = vshll.u32 %v929, 8
    %v970 = vmul.u32.u64.compose %v969, %v968
    %v971 = vextract.low.u32 %v970
    %v972 = vextract.high.u32 %v970
    %v973 = vmul.u32.u64.compose %v969, %v964
    %v974 = vextract.low.u32 %v973
    %v975 = vextract.high.u32 %v973
    %v976 = vmul.u32 %v969, %v960
    %v977 = vadd.s32 %v972, %v974
    %vm978 = vc.u32 %v972, %v974
    %v979 = vadd.s32 %v975, 1
    %v980 = vsel %vm978, %v979, %v975
    %v981 = vadd.s32 %v976, %v980
    %v982 = vadd.s32 %v981, 536870912
    %v983 = vshrl.u32 %v982, 30
    %v984 = vshll.u32 %v983, 30
    %v985 = vsub.s32 %v981, %v984
    %vm986 = vcmp.lt.s32.totalorder %v985, 0
    %v987 = vsub.s32 0, %v985
    %v988 = vsel %vm986, %v987, %v985
    %v989 = vclz %v988
    %v990 = vsub.s32 %v989, 2
    %vm991 = vcmp.gt.s32.totalorder 0, %v990
    %v992 = vsel %vm991, 0, %v990
    %v993 = vsub.s32 32, %v992
    %v994 = vshll.u32 %v985, %v992
    %v995 = vshrl.u32 %v977, %v993
    %v996 = vor.u32 %v994, %v995
    %v997 = vsub.s32 4294967266, %v992
    %v998 = vadd.s32 %v997, 127
    %v999 = vshll.u32 %v998, 23
    %v1000 = vor.u32 4788187, %v999
    %v1001 = vand.u32 2147483647, %v1000
    %v1003 = vcvt.s32.f32 %v996
    %v1004 = vmul.f32 %v1003, %v1001
    %v1005 = vxor.u32 %v1004, 2147483648
    %v1006 = vsel %vm923, %v1005, %v1004
    %v1007 = vsub.s32 4, %v983
    %v1008 = vsel %vm923, %v1007, %v983
    %v1009 = vsel %vm922, %v812, %v1006
    %v1010 = vsel %vm922, 0, %v1008
    %v1011 = vcosq.f32.pop %v1009
    %v1012 = vsinq.f32.pop %v1009
    %vm1013 = vweird.f32 %v812
    %v1014 = vadd.s32 %v1010, 3
    %v1015 = vand.u32 %v1014, 3
    %vm1016 = vcmp.lt.s32.totalorder %v1015, 2
    %vm1017 = vcmp.eq.s32.totalorder %v1015, 0
    %v1018 = vxor.u32 %v1012, 2147483648
    %v1019 = vsel %vm1017, %v1011, %v1018
    %vm1020 = vcmp.eq.s32.totalorder %v1015, 2
    %v1021 = vxor.u32 %v1011, 2147483648
    %v1022 = vsel %vm1020, %v1021, %v1012
    %v1023 = vsel %vm1016, %v1019, %v1022
    %v1024 = vsel %vm1013, nan, %v1023
    %v1025 = vsel %vm815, 1.0, %v811
    %v1026 = vsel %vm816, 1.0, %v812
    %v1027 = vrcp.pop %v1025
    %v1028 = vrcp.pop %v1026
    %v1029 = vmul.f32 %v920, %v1027
    %v1030 = vmul.f32 %v1024, %v1028
    %v1031 = vsel %vm815, 1.0, %v1029
    %v1032 = vsel %vm816, 1.0, %v1030
    %1033 = vst [vmem:[#allocation3] sm:$0x1] %v1031
    %1034 = vst [vmem:[#allocation3 + $0x1] sm:$0x1] %v1032
    %v1035 = vld [vmem:[%s3] sm:$0xff]
    %v1036 = vld [vmem:[%s3 + $0x8] sm:$0xff]
    %v1037 = vld [vmem:[%s3 + $0x10] sm:$0xff]
    %v1038 = vld [vmem:[%s3 + $0x18] sm:$0xff]
    %v1039 = vld [vmem:[%s3 + $0x20] sm:$0xff]
    %v1040 = vld [vmem:[%s3 + $0x28] sm:$0xff]
    %v1041 = vld [vmem:[%s3 + $0x30] sm:$0xff]
    %v1042 = vld [vmem:[%s3 + $0x38] sm:$0xff]
    %v1043 = vld [vmem:[%s3 + $0x40] sm:$0xff]
    %v1044 = vld [vmem:[%s3 + $0x48] sm:$0xff]
    %v1045 = vld [vmem:[%s3 + $0x50] sm:$0xff]
    %v1046 = vld [vmem:[%s3 + $0x58] sm:$0xff]
    %v1047 = vld [vmem:[%s3 + $0x60] sm:$0xff]
    %v1048 = vld [vmem:[%s3 + $0x68] sm:$0xff]
    %v1049 = vld [vmem:[%s3 + $0x70] sm:$0xff]
    %v1050 = vld [vmem:[%s3 + $0x78] sm:$0xff]
    %v1053 = vcombine.low %v801, %v802
    %v1055 = vunpack.c.l.s4 1966171168
    %v1056 = vunpack.c.0.s8 %v1055
    %v1057 = vlaneseq
    %v1058 = vshrl.u32 %v1057, 7
    %v1059 = vsub.s32 %v1056, %v1058
    %v1060 = vrot.slane %v1053, %v1059
    %v1062 = vunpack.c.l.s4 1966171168
    %v1063 = vunpack.c.0.s8 %v1062
    %v1064 = vlaneseq
    %v1065 = vshrl.u32 %v1064, 7
    %v1066 = vsub.s32 %v1063, %v1065
    %v1067 = vrot.slane %v1060, %v1066
    %1069 = vmatprep.subr.mxu0 0.0
    %v1070 = vand.u32 %v1035, 4294901760
    %1071 = vmatpush1.msra.mxu0 %v1070
    %1072 = vmatprep.subr.mxu0 0.0
    %v1073 = vand.u32 %v1036, 4294901760
    %1074 = vmatpush1.msra.mxu0 %v1073
    %1075 = vmatprep.subr.mxu0 0.0
    %v1076 = vand.u32 %v1037, 4294901760
    %1077 = vmatpush1.msra.mxu0 %v1076
    %1078 = vmatprep.subr.mxu0 0.0
    %v1079 = vand.u32 %v1038, 4294901760
    %1080 = vmatpush1.msra.mxu0 %v1079
    %1081 = vmatprep.subr.mxu0 0.0
    %v1082 = vand.u32 %v1039, 4294901760
    %1083 = vmatpush1.msra.mxu0 %v1082
    %1084 = vmatprep.subr.mxu0 0.0
    %v1085 = vand.u32 %v1040, 4294901760
    %1086 = vmatpush1.msra.mxu0 %v1085
    %1087 = vmatprep.subr.mxu0 0.0
    %v1088 = vand.u32 %v1041, 4294901760
    %1089 = vmatpush1.msra.mxu0 %v1088
    %1090 = vmatprep.subr.mxu0 0.0
    %v1091 = vand.u32 %v1042, 4294901760
    %1092 = vmatpush1.msra.mxu0 %v1091
    %1093 = vmatprep.subr.mxu0 0.0
    %v1094 = vand.u32 %v1043, 4294901760
    %1095 = vmatpush1.msra.mxu0 %v1094
    %1096 = vmatprep.subr.mxu0 0.0
    %v1097 = vand.u32 %v1044, 4294901760
    %1098 = vmatpush1.msra.mxu0 %v1097
    %1099 = vmatprep.subr.mxu0 0.0
    %v1100 = vand.u32 %v1045, 4294901760
    %1101 = vmatpush1.msra.mxu0 %v1100
    %1102 = vmatprep.subr.mxu0 0.0
    %v1103 = vand.u32 %v1046, 4294901760
    %1104 = vmatpush1.msra.mxu0 %v1103
    %1105 = vmatprep.subr.mxu0 0.0
    %v1106 = vand.u32 %v1047, 4294901760
    %1107 = vmatpush1.msra.mxu0 %v1106
    %1108 = vmatprep.subr.mxu0 0.0
    %v1109 = vand.u32 %v1048, 4294901760
    %1110 = vmatpush1.msra.mxu0 %v1109
    %1111 = vmatprep.subr.mxu0 0.0
    %v1112 = vand.u32 %v1049, 4294901760
    %1113 = vmatpush1.msra.mxu0 %v1112
    %1114 = vmatprep.subr.mxu0 0.0
    %v1115 = vand.u32 %v1050, 4294901760
    %1116 = vmatpush1.msra.mxu0 %v1115
    %1117 = vmatprep.subr.mxu0 0.0
    %1118 = vmatpush1.msra.mxu0 0.0
    %1119 = vmatprep.subr.mxu0 0.0
    %1120 = vmatpush1.msra.mxu0 0.0
    %1121 = vmatprep.subr.mxu0 0.0
    %1122 = vmatpush1.msra.mxu0 0.0
    %1123 = vmatprep.subr.mxu0 0.0
    %1124 = vmatpush1.msra.mxu0 0.0
    %1125 = vmatprep.subr.mxu0 0.0
    %1126 = vmatpush1.msra.mxu0 0.0
    %1127 = vmatprep.subr.mxu0 0.0
    %1128 = vmatpush1.msra.mxu0 0.0
    %1129 = vmatprep.subr.mxu0 0.0
    %1130 = vmatpush1.msra.mxu0 0.0
    %1131 = vmatprep.subr.mxu0 0.0
    %1132 = vmatpush1.msra.mxu0 0.0
    %1133 = vmatprep.subr.mxu0 0.0
    %1134 = vmatpush1.msra.mxu0 0.0
    %1135 = vmatprep.subr.mxu0 0.0
    %1136 = vmatpush1.msra.mxu0 0.0
    %1137 = vmatprep.subr.mxu0 0.0
    %1138 = vmatpush1.msra.mxu0 0.0
    %1139 = vmatprep.subr.mxu0 0.0
    %1140 = vmatpush1.msra.mxu0 0.0
    %1141 = vmatprep.subr.mxu0 0.0
    %1142 = vmatpush1.msra.mxu0 0.0
    %1143 = vmatprep.subr.mxu0 0.0
    %1144 = vmatpush1.msra.mxu0 0.0
    %1145 = vmatprep.subr.mxu0 0.0
    %1146 = vmatpush1.msra.mxu0 0.0
    %1147 = vmatprep.subr.mxu0 0.0
    %1148 = vmatpush1.msra.mxu0 0.0
    %1149 = vmatprep.mubr.f32.mxu0 0.0
    %v1150 = vand.u32 %v1067, 4294901760
    %v1151 = vsub.f32 %v1067, %v1150
    %v1152 = vand.u32 %v1151, 4294901760
    %v1153 = vsub.f32 %v1151, %v1152
    %v1154 = vand.u32 %v1153, 4294901760
    %1155 = vmatmul.mubr.f32.gmra.mrb[0].mxu0 %v1154
    %v1156 = vpop.f32.mrb[0].mxu0
    %v1157 = vadd.f32 0.0, %v1156
    %v1158 = vpop.f32.mrb[0].mxu0
    %1159 = vdwg.mxu0
    %1160 = vmatprep.subr.mxu0 0.0
    %v1161 = vand.u32 %v1035, 4294901760
    %v1162 = vsub.f32 %v1035, %v1161
    %v1163 = vand.u32 %v1162, 4294901760
    %v1164 = vsub.f32 %v1162, %v1163
    %v1165 = vand.u32 %v1164, 4294901760
    %1166 = vmatpush1.msra.mxu0 %v1165
    %1167 = vmatprep.subr.mxu0 0.0
    %v1168 = vand.u32 %v1036, 4294901760
    %v1169 = vsub.f32 %v1036, %v1168
    %v1170 = vand.u32 %v1169, 4294901760
    %v1171 = vsub.f32 %v1169, %v1170
    %v1172 = vand.u32 %v1171, 4294901760
    %1173 = vmatpush1.msra.mxu0 %v1172
    %1174 = vmatprep.subr.mxu0 0.0
    %v1175 = vand.u32 %v1037, 4294901760
    %v1176 = vsub.f32 %v1037, %v1175
    %v1177 = vand.u32 %v1176, 4294901760
    %v1178 = vsub.f32 %v1176, %v1177
    %v1179 = vand.u32 %v1178, 4294901760
    %1180 = vmatpush1.msra.mxu0 %v1179
    %1181 = vmatprep.subr.mxu0 0.0
    %v1182 = vand.u32 %v1038, 4294901760
    %v1183 = vsub.f32 %v1038, %v1182
    %v1184 = vand.u32 %v1183, 4294901760
    %v1185 = vsub.f32 %v1183, %v1184
    %v1186 = vand.u32 %v1185, 4294901760
    %1187 = vmatpush1.msra.mxu0 %v1186
    %1188 = vmatprep.subr.mxu0 0.0
    %v1189 = vand.u32 %v1039, 4294901760
    %v1190 = vsub.f32 %v1039, %v1189
    %v1191 = vand.u32 %v1190, 4294901760
    %v1192 = vsub.f32 %v1190, %v1191
    %v1193 = vand.u32 %v1192, 4294901760
    %1194 = vmatpush1.msra.mxu0 %v1193
    %1195 = vmatprep.subr.mxu0 0.0
    %v1196 = vand.u32 %v1040, 4294901760
    %v1197 = vsub.f32 %v1040, %v1196
    %v1198 = vand.u32 %v1197, 4294901760
    %v1199 = vsub.f32 %v1197, %v1198
    %v1200 = vand.u32 %v1199, 4294901760
    %1201 = vmatpush1.msra.mxu0 %v1200
    %1202 = vmatprep.subr.mxu0 0.0
    %v1203 = vand.u32 %v1041, 4294901760
    %v1204 = vsub.f32 %v1041, %v1203
    %v1205 = vand.u32 %v1204, 4294901760
    %v1206 = vsub.f32 %v1204, %v1205
    %v1207 = vand.u32 %v1206, 4294901760
    %1208 = vmatpush1.msra.mxu0 %v1207
    %1209 = vmatprep.subr.mxu0 0.0
    %v1210 = vand.u32 %v1042, 4294901760
    %v1211 = vsub.f32 %v1042, %v1210
    %v1212 = vand.u32 %v1211, 4294901760
    %v1213 = vsub.f32 %v1211, %v1212
    %v1214 = vand.u32 %v1213, 4294901760
    %1215 = vmatpush1.msra.mxu0 %v1214
    %1216 = vmatprep.subr.mxu0 0.0
    %v1217 = vand.u32 %v1043, 4294901760
    %v1218 = vsub.f32 %v1043, %v1217
    %v1219 = vand.u32 %v1218, 4294901760
    %v1220 = vsub.f32 %v1218, %v1219
    %v1221 = vand.u32 %v1220, 4294901760
    %1222 = vmatpush1.msra.mxu0 %v1221
    %1223 = vmatprep.subr.mxu0 0.0
    %v1224 = vand.u32 %v1044, 4294901760
    %v1225 = vsub.f32 %v1044, %v1224
    %v1226 = vand.u32 %v1225, 4294901760
    %v1227 = vsub.f32 %v1225, %v1226
    %v1228 = vand.u32 %v1227, 4294901760
    %1229 = vmatpush1.msra.mxu0 %v1228
    %1230 = vmatprep.subr.mxu0 0.0
    %v1231 = vand.u32 %v1045, 4294901760
    %v1232 = vsub.f32 %v1045, %v1231
    %v1233 = vand.u32 %v1232, 4294901760
    %v1234 = vsub.f32 %v1232, %v1233
    %v1235 = vand.u32 %v1234, 4294901760
    %1236 = vmatpush1.msra.mxu0 %v1235
    %1237 = vmatprep.subr.mxu0 0.0
    %v1238 = vand.u32 %v1046, 4294901760
    %v1239 = vsub.f32 %v1046, %v1238
    %v1240 = vand.u32 %v1239, 4294901760
    %v1241 = vsub.f32 %v1239, %v1240
    %v1242 = vand.u32 %v1241, 4294901760
    %1243 = vmatpush1.msra.mxu0 %v1242
    %1244 = vmatprep.subr.mxu0 0.0
    %v1245 = vand.u32 %v1047, 4294901760
    %v1246 = vsub.f32 %v1047, %v1245
    %v1247 = vand.u32 %v1246, 4294901760
    %v1248 = vsub.f32 %v1246, %v1247
    %v1249 = vand.u32 %v1248, 4294901760
    %1250 = vmatpush1.msra.mxu0 %v1249
    %1251 = vmatprep.subr.mxu0 0.0
    %v1252 = vand.u32 %v1048, 4294901760
    %v1253 = vsub.f32 %v1048, %v1252
    %v1254 = vand.u32 %v1253, 4294901760
    %v1255 = vsub.f32 %v1253, %v1254
    %v1256 = vand.u32 %v1255, 4294901760
    %1257 = vmatpush1.msra.mxu0 %v1256
    %1258 = vmatprep.subr.mxu0 0.0
    %v1259 = vand.u32 %v1049, 4294901760
    %v1260 = vsub.f32 %v1049, %v1259
    %v1261 = vand.u32 %v1260, 4294901760
    %v1262 = vsub.f32 %v1260, %v1261
    %v1263 = vand.u32 %v1262, 4294901760
    %1264 = vmatpush1.msra.mxu0 %v1263
    %1265 = vmatprep.subr.mxu0 0.0
    %v1266 = vand.u32 %v1050, 4294901760
    %v1267 = vsub.f32 %v1050, %v1266
    %v1268 = vand.u32 %v1267, 4294901760
    %v1269 = vsub.f32 %v1267, %v1268
    %v1270 = vand.u32 %v1269, 4294901760
    %1271 = vmatpush1.msra.mxu0 %v1270
    %1272 = vmatprep.subr.mxu0 0.0
    %1273 = vmatpush1.msra.mxu0 0.0
    %1274 = vmatprep.subr.mxu0 0.0
    %1275 = vmatpush1.msra.mxu0 0.0
    %1276 = vmatprep.subr.mxu0 0.0
    %1277 = vmatpush1.msra.mxu0 0.0
    %1278 = vmatprep.subr.mxu0 0.0
    %1279 = vmatpush1.msra.mxu0 0.0
    %1280 = vmatprep.subr.mxu0 0.0
    %1281 = vmatpush1.msra.mxu0 0.0
    %1282 = vmatprep.subr.mxu0 0.0
    %1283 = vmatpush1.msra.mxu0 0.0
    %1284 = vmatprep.subr.mxu0 0.0
    %1285 = vmatpush1.msra.mxu0 0.0
    %1286 = vmatprep.subr.mxu0 0.0
    %1287 = vmatpush1.msra.mxu0 0.0
    %1288 = vmatprep.subr.mxu0 0.0
    %1289 = vmatpush1.msra.mxu0 0.0
    %1290 = vmatprep.subr.mxu0 0.0
    %1291 = vmatpush1.msra.mxu0 0.0
    %1292 = vmatprep.subr.mxu0 0.0
    %1293 = vmatpush1.msra.mxu0 0.0
    %1294 = vmatprep.subr.mxu0 0.0
    %1295 = vmatpush1.msra.mxu0 0.0
    %1296 = vmatprep.subr.mxu0 0.0
    %1297 = vmatpush1.msra.mxu0 0.0
    %1298 = vmatprep.subr.mxu0 0.0
    %1299 = vmatpush1.msra.mxu0 0.0
    %1300 = vmatprep.subr.mxu0 0.0
    %1301 = vmatpush1.msra.mxu0 0.0
    %1302 = vmatprep.subr.mxu0 0.0
    %1303 = vmatpush1.msra.mxu0 0.0
    %1304 = vmatprep.mubr.f32.mxu0 0.0
    %v1305 = vand.u32 %v1067, 4294901760
    %1306 = vmatmul.mubr.f32.gmra.mrb[0].mxu0 %v1305
    %v1307 = vpop.f32.mrb[0].mxu0
    %v1308 = vadd.f32 %v1157, %v1307
    %v1309 = vpop.f32.mrb[0].mxu0
    %1310 = vdwg.mxu0
    %1311 = vmatprep.subr.mxu0 0.0
    %v1312 = vand.u32 %v1035, 4294901760
    %v1313 = vsub.f32 %v1035, %v1312
    %1314 = vmatpush1.msra.mxu0 %v1313
    %1315 = vmatprep.subr.mxu0 0.0
    %v1316 = vand.u32 %v1036, 4294901760
    %v1317 = vsub.f32 %v1036, %v1316
    %1318 = vmatpush1.msra.mxu0 %v1317
    %1319 = vmatprep.subr.mxu0 0.0
    %v1320 = vand.u32 %v1037, 4294901760
    %v1321 = vsub.f32 %v1037, %v1320
    %1322 = vmatpush1.msra.mxu0 %v1321
    %1323 = vmatprep.subr.mxu0 0.0
    %v1324 = vand.u32 %v1038, 4294901760
    %v1325 = vsub.f32 %v1038, %v1324
    %1326 = vmatpush1.msra.mxu0 %v1325
    %1327 = vmatprep.subr.mxu0 0.0
    %v1328 = vand.u32 %v1039, 4294901760
    %v1329 = vsub.f32 %v1039, %v1328
    %1330 = vmatpush1.msra.mxu0 %v1329
    %1331 = vmatprep.subr.mxu0 0.0
    %v1332 = vand.u32 %v1040, 4294901760
    %v1333 = vsub.f32 %v1040, %v1332
    %1334 = vmatpush1.msra.mxu0 %v1333
    %1335 = vmatprep.subr.mxu0 0.0
    %v1336 = vand.u32 %v1041, 4294901760
    %v1337 = vsub.f32 %v1041, %v1336
    %1338 = vmatpush1.msra.mxu0 %v1337
    %1339 = vmatprep.subr.mxu0 0.0
    %v1340 = vand.u32 %v1042, 4294901760
    %v1341 = vsub.f32 %v1042, %v1340
    %1342 = vmatpush1.msra.mxu0 %v1341
    %1343 = vmatprep.subr.mxu0 0.0
    %v1344 = vand.u32 %v1043, 4294901760
    %v1345 = vsub.f32 %v1043, %v1344
    %1346 = vmatpush1.msra.mxu0 %v1345
    %1347 = vmatprep.subr.mxu0 0.0
    %v1348 = vand.u32 %v1044, 4294901760
    %v1349 = vsub.f32 %v1044, %v1348
    %1350 = vmatpush1.msra.mxu0 %v1349
    %1351 = vmatprep.subr.mxu0 0.0
    %v1352 = vand.u32 %v1045, 4294901760
    %v1353 = vsub.f32 %v1045, %v1352
    %1354 = vmatpush1.msra.mxu0 %v1353
    %1355 = vmatprep.subr.mxu0 0.0
    %v1356 = vand.u32 %v1046, 4294901760
    %v1357 = vsub.f32 %v1046, %v1356
    %1358 = vmatpush1.msra.mxu0 %v1357
    %1359 = vmatprep.subr.mxu0 0.0
    %v1360 = vand.u32 %v1047, 4294901760
    %v1361 = vsub.f32 %v1047, %v1360
    %1362 = vmatpush1.msra.mxu0 %v1361
    %1363 = vmatprep.subr.mxu0 0.0
    %v1364 = vand.u32 %v1048, 4294901760
    %v1365 = vsub.f32 %v1048, %v1364
    %1366 = vmatpush1.msra.mxu0 %v1365
    %1367 = vmatprep.subr.mxu0 0.0
    %v1368 = vand.u32 %v1049, 4294901760
    %v1369 = vsub.f32 %v1049, %v1368
    %1370 = vmatpush1.msra.mxu0 %v1369
    %1371 = vmatprep.subr.mxu0 0.0
    %v1372 = vand.u32 %v1050, 4294901760
    %v1373 = vsub.f32 %v1050, %v1372
    %1374 = vmatpush1.msra.mxu0 %v1373
    %1375 = vmatprep.subr.mxu0 0.0
    %1376 = vmatpush1.msra.mxu0 0.0
    %1377 = vmatprep.subr.mxu0 0.0
    %1378 = vmatpush1.msra.mxu0 0.0
    %1379 = vmatprep.subr.mxu0 0.0
    %1380 = vmatpush1.msra.mxu0 0.0
    %1381 = vmatprep.subr.mxu0 0.0
    %1382 = vmatpush1.msra.mxu0 0.0
    %1383 = vmatprep.subr.mxu0 0.0
    %1384 = vmatpush1.msra.mxu0 0.0
    %1385 = vmatprep.subr.mxu0 0.0
    %1386 = vmatpush1.msra.mxu0 0.0
    %1387 = vmatprep.subr.mxu0 0.0
    %1388 = vmatpush1.msra.mxu0 0.0
    %1389 = vmatprep.subr.mxu0 0.0
    %1390 = vmatpush1.msra.mxu0 0.0
    %1391 = vmatprep.subr.mxu0 0.0
    %1392 = vmatpush1.msra.mxu0 0.0
    %1393 = vmatprep.subr.mxu0 0.0
    %1394 = vmatpush1.msra.mxu0 0.0
    %1395 = vmatprep.subr.mxu0 0.0
    %1396 = vmatpush1.msra.mxu0 0.0
    %1397 = vmatprep.subr.mxu0 0.0
    %1398 = vmatpush1.msra.mxu0 0.0
    %1399 = vmatprep.subr.mxu0 0.0
    %1400 = vmatpush1.msra.mxu0 0.0
    %1401 = vmatprep.subr.mxu0 0.0
    %1402 = vmatpush1.msra.mxu0 0.0
    %1403 = vmatprep.subr.mxu0 0.0
    %1404 = vmatpush1.msra.mxu0 0.0
    %1405 = vmatprep.subr.mxu0 0.0
    %1406 = vmatpush1.msra.mxu0 0.0
    %1407 = vmatprep.mubr.f32.mxu0 0.0
    %v1408 = vand.u32 %v1067, 4294901760
    %v1409 = vsub.f32 %v1067, %v1408
    %1410 = vmatmul.mubr.f32.gmra.mrb[0].mxu0 %v1409
    %v1411 = vpop.f32.mrb[0].mxu0
    %v1412 = vadd.f32 %v1308, %v1411
    %v1413 = vpop.f32.mrb[0].mxu0
    %1414 = vdwg.mxu0
    %1415 = vmatprep.subr.mxu0 0.0
    %v1416 = vand.u32 %v1035, 4294901760
    %1417 = vmatpush1.msra.mxu0 %v1416
    %1418 = vmatprep.subr.mxu0 0.0
    %v1419 = vand.u32 %v1036, 4294901760
    %1420 = vmatpush1.msra.mxu0 %v1419
    %1421 = vmatprep.subr.mxu0 0.0
    %v1422 = vand.u32 %v1037, 4294901760
    %1423 = vmatpush1.msra.mxu0 %v1422
    %1424 = vmatprep.subr.mxu0 0.0
    %v1425 = vand.u32 %v1038, 4294901760
    %1426 = vmatpush1.msra.mxu0 %v1425
    %1427 = vmatprep.subr.mxu0 0.0
    %v1428 = vand.u32 %v1039, 4294901760
    %1429 = vmatpush1.msra.mxu0 %v1428
    %1430 = vmatprep.subr.mxu0 0.0
    %v1431 = vand.u32 %v1040, 4294901760
    %1432 = vmatpush1.msra.mxu0 %v1431
    %1433 = vmatprep.subr.mxu0 0.0
    %v1434 = vand.u32 %v1041, 4294901760
    %1435 = vmatpush1.msra.mxu0 %v1434
    %1436 = vmatprep.subr.mxu0 0.0
    %v1437 = vand.u32 %v1042, 4294901760
    %1438 = vmatpush1.msra.mxu0 %v1437
    %1439 = vmatprep.subr.mxu0 0.0
    %v1440 = vand.u32 %v1043, 4294901760
    %1441 = vmatpush1.msra.mxu0 %v1440
    %1442 = vmatprep.subr.mxu0 0.0
    %v1443 = vand.u32 %v1044, 4294901760
    %1444 = vmatpush1.msra.mxu0 %v1443
    %1445 = vmatprep.subr.mxu0 0.0
    %v1446 = vand.u32 %v1045, 4294901760
    %1447 = vmatpush1.msra.mxu0 %v1446
    %1448 = vmatprep.subr.mxu0 0.0
    %v1449 = vand.u32 %v1046, 4294901760
    %1450 = vmatpush1.msra.mxu0 %v1449
    %1451 = vmatprep.subr.mxu0 0.0
    %v1452 = vand.u32 %v1047, 4294901760
    %1453 = vmatpush1.msra.mxu0 %v1452
    %1454 = vmatprep.subr.mxu0 0.0
    %v1455 = vand.u32 %v1048, 4294901760
    %1456 = vmatpush1.msra.mxu0 %v1455
    %1457 = vmatprep.subr.mxu0 0.0
    %v1458 = vand.u32 %v1049, 4294901760
    %1459 = vmatpush1.msra.mxu0 %v1458
    %1460 = vmatprep.subr.mxu0 0.0
    %v1461 = vand.u32 %v1050, 4294901760
    %1462 = vmatpush1.msra.mxu0 %v1461
    %1463 = vmatprep.subr.mxu0 0.0
    %1464 = vmatpush1.msra.mxu0 0.0
    %1465 = vmatprep.subr.mxu0 0.0
    %1466 = vmatpush1.msra.mxu0 0.0
    %1467 = vmatprep.subr.mxu0 0.0
    %1468 = vmatpush1.msra.mxu0 0.0
    %1469 = vmatprep.subr.mxu0 0.0
    %1470 = vmatpush1.msra.mxu0 0.0
    %1471 = vmatprep.subr.mxu0 0.0
    %1472 = vmatpush1.msra.mxu0 0.0
    %1473 = vmatprep.subr.mxu0 0.0
    %1474 = vmatpush1.msra.mxu0 0.0
    %1475 = vmatprep.subr.mxu0 0.0
    %1476 = vmatpush1.msra.mxu0 0.0
    %1477 = vmatprep.subr.mxu0 0.0
    %1478 = vmatpush1.msra.mxu0 0.0
    %1479 = vmatprep.subr.mxu0 0.0
    %1480 = vmatpush1.msra.mxu0 0.0
    %1481 = vmatprep.subr.mxu0 0.0
    %1482 = vmatpush1.msra.mxu0 0.0
    %1483 = vmatprep.subr.mxu0 0.0
    %1484 = vmatpush1.msra.mxu0 0.0
    %1485 = vmatprep.subr.mxu0 0.0
    %1486 = vmatpush1.msra.mxu0 0.0
    %1487 = vmatprep.subr.mxu0 0.0
    %1488 = vmatpush1.msra.mxu0 0.0
    %1489 = vmatprep.subr.mxu0 0.0
    %1490 = vmatpush1.msra.mxu0 0.0
    %1491 = vmatprep.subr.mxu0 0.0
    %1492 = vmatpush1.msra.mxu0 0.0
    %1493 = vmatprep.subr.mxu0 0.0
    %1494 = vmatpush1.msra.mxu0 0.0
    %1495 = vmatprep.mubr.f32.mxu0 0.0
    %v1496 = vand.u32 %v1067, 4294901760
    %v1497 = vsub.f32 %v1067, %v1496
    %v1498 = vand.u32 %v1497, 4294901760
    %1499 = vmatmul.mubr.f32.gmra.mrb[0].mxu0 %v1498
    %v1500 = vpop.f32.mrb[0].mxu0
    %v1501 = vadd.f32 %v1412, %v1500
    %v1502 = vpop.f32.mrb[0].mxu0
    %1503 = vdwg.mxu0
    %1504 = vmatprep.subr.mxu0 0.0
    %v1505 = vand.u32 %v1035, 4294901760
    %v1506 = vsub.f32 %v1035, %v1505
    %v1507 = vand.u32 %v1506, 4294901760
    %1508 = vmatpush1.msra.mxu0 %v1507
    %1509 = vmatprep.subr.mxu0 0.0
    %v1510 = vand.u32 %v1036, 4294901760
    %v1511 = vsub.f32 %v1036, %v1510
    %v1512 = vand.u32 %v1511, 4294901760
    %1513 = vmatpush1.msra.mxu0 %v1512
    %1514 = vmatprep.subr.mxu0 0.0
    %v1515 = vand.u32 %v1037, 4294901760
    %v1516 = vsub.f32 %v1037, %v1515
    %v1517 = vand.u32 %v1516, 4294901760
    %1518 = vmatpush1.msra.mxu0 %v1517
    %1519 = vmatprep.subr.mxu0 0.0
    %v1520 = vand.u32 %v1038, 4294901760
    %v1521 = vsub.f32 %v1038, %v1520
    %v1522 = vand.u32 %v1521, 4294901760
    %1523 = vmatpush1.msra.mxu0 %v1522
    %1524 = vmatprep.subr.mxu0 0.0
    %v1525 = vand.u32 %v1039, 4294901760
    %v1526 = vsub.f32 %v1039, %v1525
    %v1527 = vand.u32 %v1526, 4294901760
    %1528 = vmatpush1.msra.mxu0 %v1527
    %1529 = vmatprep.subr.mxu0 0.0
    %v1530 = vand.u32 %v1040, 4294901760
    %v1531 = vsub.f32 %v1040, %v1530
    %v1532 = vand.u32 %v1531, 4294901760
    %1533 = vmatpush1.msra.mxu0 %v1532
    %1534 = vmatprep.subr.mxu0 0.0
    %v1535 = vand.u32 %v1041, 4294901760
    %v1536 = vsub.f32 %v1041, %v1535
    %v1537 = vand.u32 %v1536, 4294901760
    %1538 = vmatpush1.msra.mxu0 %v1537
    %1539 = vmatprep.subr.mxu0 0.0
    %v1540 = vand.u32 %v1042, 4294901760
    %v1541 = vsub.f32 %v1042, %v1540
    %v1542 = vand.u32 %v1541, 4294901760
    %1543 = vmatpush1.msra.mxu0 %v1542
    %1544 = vmatprep.subr.mxu0 0.0
    %v1545 = vand.u32 %v1043, 4294901760
    %v1546 = vsub.f32 %v1043, %v1545
    %v1547 = vand.u32 %v1546, 4294901760
    %1548 = vmatpush1.msra.mxu0 %v1547
    %1549 = vmatprep.subr.mxu0 0.0
    %v1550 = vand.u32 %v1044, 4294901760
    %v1551 = vsub.f32 %v1044, %v1550
    %v1552 = vand.u32 %v1551, 4294901760
    %1553 = vmatpush1.msra.mxu0 %v1552
    %1554 = vmatprep.subr.mxu0 0.0
    %v1555 = vand.u32 %v1045, 4294901760
    %v1556 = vsub.f32 %v1045, %v1555
    %v1557 = vand.u32 %v1556, 4294901760
    %1558 = vmatpush1.msra.mxu0 %v1557
    %1559 = vmatprep.subr.mxu0 0.0
    %v1560 = vand.u32 %v1046, 4294901760
    %v1561 = vsub.f32 %v1046, %v1560
    %v1562 = vand.u32 %v1561, 4294901760
    %1563 = vmatpush1.msra.mxu0 %v1562
    %1564 = vmatprep.subr.mxu0 0.0
    %v1565 = vand.u32 %v1047, 4294901760
    %v1566 = vsub.f32 %v1047, %v1565
    %v1567 = vand.u32 %v1566, 4294901760
    %1568 = vmatpush1.msra.mxu0 %v1567
    %1569 = vmatprep.subr.mxu0 0.0
    %v1570 = vand.u32 %v1048, 4294901760
    %v1571 = vsub.f32 %v1048, %v1570
    %v1572 = vand.u32 %v1571, 4294901760
    %1573 = vmatpush1.msra.mxu0 %v1572
    %1574 = vmatprep.subr.mxu0 0.0
    %v1575 = vand.u32 %v1049, 4294901760
    %v1576 = vsub.f32 %v1049, %v1575
    %v1577 = vand.u32 %v1576, 4294901760
    %1578 = vmatpush1.msra.mxu0 %v1577
    %1579 = vmatprep.subr.mxu0 0.0
    %v1580 = vand.u32 %v1050, 4294901760
    %v1581 = vsub.f32 %v1050, %v1580
    %v1582 = vand.u32 %v1581, 4294901760
    %1583 = vmatpush1.msra.mxu0 %v1582
    %1584 = vmatprep.subr.mxu0 0.0
    %1585 = vmatpush1.msra.mxu0 0.0
    %1586 = vmatprep.subr.mxu0 0.0
    %1587 = vmatpush1.msra.mxu0 0.0
    %1588 = vmatprep.subr.mxu0 0.0
    %1589 = vmatpush1.msra.mxu0 0.0
    %1590 = vmatprep.subr.mxu0 0.0
    %1591 = vmatpush1.msra.mxu0 0.0
    %1592 = vmatprep.subr.mxu0 0.0
    %1593 = vmatpush1.msra.mxu0 0.0
    %1594 = vmatprep.subr.mxu0 0.0
    %1595 = vmatpush1.msra.mxu0 0.0
    %1596 = vmatprep.subr.mxu0 0.0
    %1597 = vmatpush1.msra.mxu0 0.0
    %1598 = vmatprep.subr.mxu0 0.0
    %1599 = vmatpush1.msra.mxu0 0.0
    %1600 = vmatprep.subr.mxu0 0.0
    %1601 = vmatpush1.msra.mxu0 0.0
    %1602 = vmatprep.subr.mxu0 0.0
    %1603 = vmatpush1.msra.mxu0 0.0
    %1604 = vmatprep.subr.mxu0 0.0
    %1605 = vmatpush1.msra.mxu0 0.0
    %1606 = vmatprep.subr.mxu0 0.0
    %1607 = vmatpush1.msra.mxu0 0.0
    %1608 = vmatprep.subr.mxu0 0.0
    %1609 = vmatpush1.msra.mxu0 0.0
    %1610 = vmatprep.subr.mxu0 0.0
    %1611 = vmatpush1.msra.mxu0 0.0
    %1612 = vmatprep.subr.mxu0 0.0
    %1613 = vmatpush1.msra.mxu0 0.0
    %1614 = vmatprep.subr.mxu0 0.0
    %1615 = vmatpush1.msra.mxu0 0.0
    %1616 = vmatprep.mubr.f32.mxu0 0.0
    %v1617 = vand.u32 %v1067, 4294901760
    %1618 = vmatmul.mubr.f32.gmra.mrb[0].mxu0 %v1617
    %v1619 = vpop.f32.mrb[0].mxu0
    %v1620 = vadd.f32 %v1501, %v1619
    %v1621 = vpop.f32.mrb[0].mxu0
    %1622 = vdwg.mxu0
    %1623 = vmatprep.subr.mxu0 0.0
    %v1624 = vand.u32 %v1035, 4294901760
    %1625 = vmatpush1.msra.mxu0 %v1624
    %1626 = vmatprep.subr.mxu0 0.0
    %v1627 = vand.u32 %v1036, 4294901760
    %1628 = vmatpush1.msra.mxu0 %v1627
    %1629 = vmatprep.subr.mxu0 0.0
    %v1630 = vand.u32 %v1037, 4294901760
    %1631 = vmatpush1.msra.mxu0 %v1630
    %1632 = vmatprep.subr.mxu0 0.0
    %v1633 = vand.u32 %v1038, 4294901760
    %1634 = vmatpush1.msra.mxu0 %v1633
    %1635 = vmatprep.subr.mxu0 0.0
    %v1636 = vand.u32 %v1039, 4294901760
    %1637 = vmatpush1.msra.mxu0 %v1636
    %1638 = vmatprep.subr.mxu0 0.0
    %v1639 = vand.u32 %v1040, 4294901760
    %1640 = vmatpush1.msra.mxu0 %v1639
    %1641 = vmatprep.subr.mxu0 0.0
    %v1642 = vand.u32 %v1041, 4294901760
    %1643 = vmatpush1.msra.mxu0 %v1642
    %1644 = vmatprep.subr.mxu0 0.0
    %v1645 = vand.u32 %v1042, 4294901760
    %1646 = vmatpush1.msra.mxu0 %v1645
    %1647 = vmatprep.subr.mxu0 0.0
    %v1648 = vand.u32 %v1043, 4294901760
    %1649 = vmatpush1.msra.mxu0 %v1648
    %1650 = vmatprep.subr.mxu0 0.0
    %v1651 = vand.u32 %v1044, 4294901760
    %1652 = vmatpush1.msra.mxu0 %v1651
    %1653 = vmatprep.subr.mxu0 0.0
    %v1654 = vand.u32 %v1045, 4294901760
    %1655 = vmatpush1.msra.mxu0 %v1654
    %1656 = vmatprep.subr.mxu0 0.0
    %v1657 = vand.u32 %v1046, 4294901760
    %1658 = vmatpush1.msra.mxu0 %v1657
    %1659 = vmatprep.subr.mxu0 0.0
    %v1660 = vand.u32 %v1047, 4294901760
    %1661 = vmatpush1.msra.mxu0 %v1660
    %1662 = vmatprep.subr.mxu0 0.0
    %v1663 = vand.u32 %v1048, 4294901760
    %1664 = vmatpush1.msra.mxu0 %v1663
    %1665 = vmatprep.subr.mxu0 0.0
    %v1666 = vand.u32 %v1049, 4294901760
    %1667 = vmatpush1.msra.mxu0 %v1666
    %1668 = vmatprep.subr.mxu0 0.0
    %v1669 = vand.u32 %v1050, 4294901760
    %1670 = vmatpush1.msra.mxu0 %v1669
    %1671 = vmatprep.subr.mxu0 0.0
    %1672 = vmatpush1.msra.mxu0 0.0
    %1673 = vmatprep.subr.mxu0 0.0
    %1674 = vmatpush1.msra.mxu0 0.0
    %1675 = vmatprep.subr.mxu0 0.0
    %1676 = vmatpush1.msra.mxu0 0.0
    %1677 = vmatprep.subr.mxu0 0.0
    %1678 = vmatpush1.msra.mxu0 0.0
    %1679 = vmatprep.subr.mxu0 0.0
    %1680 = vmatpush1.msra.mxu0 0.0
    %1681 = vmatprep.subr.mxu0 0.0
    %1682 = vmatpush1.msra.mxu0 0.0
    %1683 = vmatprep.subr.mxu0 0.0
    %1684 = vmatpush1.msra.mxu0 0.0
    %1685 = vmatprep.subr.mxu0 0.0
    %1686 = vmatpush1.msra.mxu0 0.0
    %1687 = vmatprep.subr.mxu0 0.0
    %1688 = vmatpush1.msra.mxu0 0.0
    %1689 = vmatprep.subr.mxu0 0.0
    %1690 = vmatpush1.msra.mxu0 0.0
    %1691 = vmatprep.subr.mxu0 0.0
    %1692 = vmatpush1.msra.mxu0 0.0
    %1693 = vmatprep.subr.mxu0 0.0
    %1694 = vmatpush1.msra.mxu0 0.0
    %1695 = vmatprep.subr.mxu0 0.0
    %1696 = vmatpush1.msra.mxu0 0.0
    %1697 = vmatprep.subr.mxu0 0.0
    %1698 = vmatpush1.msra.mxu0 0.0
    %1699 = vmatprep.subr.mxu0 0.0
    %1700 = vmatpush1.msra.mxu0 0.0
    %1701 = vmatprep.subr.mxu0 0.0
    %1702 = vmatpush1.msra.mxu0 0.0
    %1703 = vmatprep.mubr.f32.mxu0 0.0
    %v1704 = vand.u32 %v1067, 4294901760
    %1705 = vmatmul.mubr.f32.gmra.mrb[0].mxu0 %v1704
    %v1706 = vpop.f32.mrb[0].mxu0
    %v1707 = vadd.f32 %v1620, %v1706
    %v1708 = vpop.f32.mrb[0].mxu0
    %1709 = vdwg.mxu0
    %v1712 = vunpack.c.l.s4 1966171168
    %v1713 = vunpack.c.0.s8 %v1712
    %v1714 = vlaneseq
    %v1715 = vshrl.u32 %v1714, 7
    %v1716 = vsub.s32 %v1713, %v1715
    %v1717 = vrot.slane %v1707, %v1716
    %v1718 = vcombine.high %v1717, %v1717
    %v1720 = vunpack.c.l.s4 1966171168
    %v1721 = vunpack.c.0.s8 %v1720
    %v1722 = vlaneseq
    %v1723 = vshrl.u32 %v1722, 7
    %v1724 = vsub.s32 %v1721, %v1723
    %v1725 = vrot.slane %v1717, %v1724
    %v1727 = vunpack.c.l.s4 1966171168
    %v1728 = vunpack.c.0.s8 %v1727
    %v1729 = vlaneseq
    %v1730 = vshrl.u32 %v1729, 7
    %v1731 = vsub.s32 %v1728, %v1730
    %v1732 = vrot.slane %v1718, %v1731
    %vm1735 = vcmask 122880
    %1736 = vst.msk [vmem:[#allocation5] sm:$0x1] %vm1735, %v1725
    %1737 = vst.msk [vmem:[#allocation5 + $0x1] sm:$0x1] %vm1735, %v1732
    // Predicated region
    $region22: #{tpu_custom_call.1} parent=1 // pred_check
      _
    $region23: #{tpu_custom_call.1} parent=1 // pred_check_branch
      %1739 = sbr.rel (0) target = $region25
    $region24: #{tpu_custom_call.1} parent=1 // pred_region
      %s1741 = ssub.s32 32, 32
      %1742 = vsyncadd [#allocation4], %s1741
      %s1743 = sshll.u32 [#allocation3], 4
      %s1744 = int_to_ptr.vmem [resolvable:$true] %s1743
      %1749 = dma.vmem_to_hbm [thread:$0]  %s1744, 32, %s4, [#allocation4], 16, 16, 1
    $region25: #{tpu_custom_call.1} parent=1 // pred_fallthru
      _
    // Predicated region
    $region26: #{tpu_custom_call.1} parent=1 // pred_check
      _
    $region27: #{tpu_custom_call.1} parent=1 // pred_check_branch
      %1751 = sbr.rel (0) target = $region29
    $region28: #{tpu_custom_call.1} parent=1 // pred_region
      %s1753 = ssub.s32 32, 32
      %1754 = vsyncadd [#allocation6], %s1753
      %s1755 = sshll.u32 [#allocation5], 4
      %s1756 = int_to_ptr.vmem [resolvable:$true] %s1755
      %1761 = dma.vmem_to_hbm [thread:$0]  %s1756, 32, %s5, [#allocation6], 16, 16, 1
    $region29: #{tpu_custom_call.1} parent=1 // pred_fallthru
      _
    // Predicated region
    $region30: #{tpu_custom_call.1} parent=1 // pred_check
      _
    $region31: #{tpu_custom_call.1} parent=1 // pred_check_branch
      %1763 = sbr.rel (0) target = $region33
    $region32: #{tpu_custom_call.1} parent=1 // pred_region
      %1764 = dma.done [#allocation4], 32
    $region33: #{tpu_custom_call.1} parent=1 // pred_fallthru
      _
    // Predicated region
    $region34: #{tpu_custom_call.1} parent=1 // pred_check
      _
    $region35: #{tpu_custom_call.1} parent=1 // pred_check_branch
      %1766 = sbr.rel (0) target = $region37
    $region36: #{tpu_custom_call.1} parent=1 // pred_region
      %1767 = dma.done [#allocation6], 32
    $region37: #{tpu_custom_call.1} parent=1 // pred_fallthru
      _
    %1768 = vsyncpa [#allocation4], 1
    %1769 = vsyncpa [#allocation6], 1

</llo_original>
